<compile_context>
chip_gen: v5e
topology: v5e:2x2
jax: 0.10.0
libtpu: 0.0.40
codegen_flags: <defaults>
</compile_context>

<pallas_src>
import random
import numpy as np
import jax
import jax.numpy as jnp
from jax.experimental import pallas as pl
from jax.experimental.pallas import tpu as pltpu


# ----------------------------------------------------------------------------
# Encoder: single-layer LSTM over src, single program.
#   * input projection for ALL timesteps hoisted into one MXU matmul
#   * per-step recurrence is only h @ Whh (+ precomputed x-proj + bias)
#   * gate order (i, f, o, g): one sigmoid call on (batch, 3*hid)
# ----------------------------------------------------------------------------
def encoder_kernel(src_ref, wih_ref, whh_ref, b_ref, h_out_ref, c_out_ref,
                   xproj_sc):
    batch = h_out_ref.shape[0]
    hid = whh_ref.shape[0]
    n_rows = src_ref.shape[0]                 # src_len * batch
    src_len = n_rows // batch

    # Hoisted input projection: one (src_len*batch, enc_in) @ (enc_in, 4*hid)
    # matmul off the serial recurrence path (96-row MXU occupancy).
    xproj_sc[...] = jnp.dot(src_ref[...], wih_ref[...],
                            preferred_element_type=jnp.float32)

    def step(t, carry):
        h, c = carry
        row = pl.multiple_of(t * batch, batch)
        x_gate = xproj_sc[pl.ds(row, batch), :]            # (batch, 4*hid) f32
        gates = (x_gate
                 + jnp.dot(h.astype(jnp.bfloat16), whh_ref[...],
                           preferred_element_type=jnp.float32)
                 + b_ref[...])
        sig = jax.nn.sigmoid(gates[:, :3 * hid])           # i | f | o
        i_g = sig[:, 0 * hid:1 * hid]
        f_g = sig[:, 1 * hid:2 * hid]
        o_g = sig[:, 2 * hid:3 * hid]
        g_g = jnp.tanh(gates[:, 3 * hid:4 * hid])
        c_new = f_g * c + i_g * g_g
        h_new = o_g * jnp.tanh(c_new)
        return (h_new, c_new)

    init = (jnp.zeros((batch, hid), jnp.float32),
            jnp.zeros((batch, hid), jnp.float32))
    h, c = jax.lax.fori_loop(0, src_len, step, init, unroll=True)
    h_out_ref[...] = h
    c_out_ref[...] = c


def run_encoder(src, wih, whh, b):
    src_len, batch, enc_in = src.shape
    hid = whh.shape[0]
    # Host-side reshape + bf16 cast of the activation (one-time, off-kernel).
    src2d = src.reshape(src_len * batch, enc_in).astype(jnp.bfloat16)
    return pl.pallas_call(
        encoder_kernel,
        out_shape=(jax.ShapeDtypeStruct((batch, hid), jnp.float32),
                   jax.ShapeDtypeStruct((batch, hid), jnp.float32)),
        in_specs=[pl.BlockSpec(memory_space=pltpu.MemorySpace.VMEM)] * 4,
        out_specs=(pl.BlockSpec(memory_space=pltpu.MemorySpace.VMEM),
                   pl.BlockSpec(memory_space=pltpu.MemorySpace.VMEM)),
        scratch_shapes=[pltpu.VMEM((src_len * batch, 4 * hid), jnp.float32)],
    )(src2d, wih, whh, b)


# ----------------------------------------------------------------------------
# Decoder: the whole target loop is ONE program (grid=(1,)), statically
# unrolled over the decoding steps.
#   * teacher-forcing mask scalar-prefetched into SMEM
#   * teacher-path input projections precomputed outside (per-step slab)
#   * per-step in-kernel matmuls: h @ Whh and h @ Wout only
#   * greedy feedback (argmax -> one-hot @ emb_proj) gated by pl.when on the
#     NEXT step's teacher-forcing decision; result kept in VMEM scratch
#   * lane-dense logits written at static step index; argmax done on host
# ----------------------------------------------------------------------------
def decoder_seq_kernel(tf_ref,                 # SMEM (trg_len,) int32 (prefetch)
                       xtproj_ref,             # (steps, batch, 4*hid) f32
                       h0_ref, c0_ref,         # (batch, hid) f32
                       embproj_ref,            # (vocab, 4*hid) bf16  (= emb @ Wih)
                       whh_ref,                # (hid, 4*hid) bf16
                       b_ref,                  # (1, 4*hid) f32
                       wout_ref,               # (hid, vocab) bf16
                       bout_ref,               # (1, vocab) f32
                       logits_ref,             # out (steps, batch, vocab) f32
                       xgproj_sc):             # VMEM (batch, 4*hid) f32 scratch
    steps, batch, _ = xtproj_ref.shape
    hid = whh_ref.shape[0]
    vocab = embproj_ref.shape[0]

    xgproj_sc[...] = jnp.zeros_like(xgproj_sc)   # hygiene: never read garbage

    h = h0_ref[...]
    c = c0_ref[...]

    for t in range(steps):                       # statically unrolled (small)
        # Input-side gate contribution: teacher token trg[t] (always at t==0)
        # or the previous greedy prediction's projection (VMEM scratch).
        if t == 0:
            xproj = xtproj_ref[0]
        else:
            use_trg = tf_ref[t] != 0
            xproj = jnp.where(use_trg, xtproj_ref[t], xgproj_sc[...])

        gates = (xproj
                 + jnp.dot(h.astype(jnp.bfloat16), whh_ref[...],
                           preferred_element_type=jnp.float32)
                 + b_ref[...])
        sig = jax.nn.sigmoid(gates[:, :3 * hid])            # i | f | o
        i_g = sig[:, 0 * hid:1 * hid]
        f_g = sig[:, 1 * hid:2 * hid]
        o_g = sig[:, 2 * hid:3 * hid]
        g_g = jnp.tanh(gates[:, 3 * hid:4 * hid])
        c = f_g * c + i_g * g_g
        h = o_g * jnp.tanh(c)

        # Output projection (lane-dense vocab).
        logits = (jnp.dot(h.astype(jnp.bfloat16), wout_ref[...],
                          preferred_element_type=jnp.float32) + bout_ref[...])
        logits_ref[t] = logits

        # Greedy feedback only if the NEXT step is not teacher-forced.
        if t + 1 < steps:
            @pl.when(tf_ref[t + 1] == 0)
            def _():
                vidx = jax.lax.broadcasted_iota(jnp.int32, (batch, vocab), 1)
                mx = jnp.max(logits, axis=1, keepdims=True)
                # first maximal index, same tie-break as torch.argmax
                best = jnp.min(jnp.where(logits == mx, vidx, vocab),
                               axis=1, keepdims=True)
                onehot = (vidx == best).astype(jnp.bfloat16)
                # row-select of the pre-projected embedding table (bf16 MXU)
                xgproj_sc[...] = jnp.dot(onehot, embproj_ref[...],
                                         preferred_element_type=jnp.float32)


def run_decoder_sequence(tf_mask, x_teacher_proj, h0, c0, emb_proj_bf16,
                         whh, b, wout, bout):
    steps, batch, gdim = x_teacher_proj.shape
    hid = whh.shape[0]
    vocab = wout.shape[1]

    return pl.pallas_call(
        decoder_seq_kernel,
        out_shape=jax.ShapeDtypeStruct((steps, batch, vocab), jnp.float32),
        grid_spec=pltpu.PrefetchScalarGridSpec(
            num_scalar_prefetch=1,
            grid=(1,),
            in_specs=[
                pl.BlockSpec((steps, batch, gdim), lambda i, tf: (0, 0, 0)),
                pl.BlockSpec((batch, hid), lambda i, tf: (0, 0)),
                pl.BlockSpec((batch, hid), lambda i, tf: (0, 0)),
                pl.BlockSpec((vocab, gdim), lambda i, tf: (0, 0)),
                pl.BlockSpec((hid, gdim), lambda i, tf: (0, 0)),
                pl.BlockSpec((1, gdim), lambda i, tf: (0, 0)),
                pl.BlockSpec((hid, vocab), lambda i, tf: (0, 0)),
                pl.BlockSpec((1, vocab), lambda i, tf: (0, 0)),
            ],
            out_specs=pl.BlockSpec((steps, batch, vocab),
                                   lambda i, tf: (0, 0, 0)),
            scratch_shapes=[pltpu.VMEM((batch, gdim), jnp.float32)]),
        compiler_params=pltpu.CompilerParams(
            dimension_semantics=("arbitrary",)),
    )(tf_mask, x_teacher_proj, h0, c0, emb_proj_bf16, whh, b, wout, bout)


# ----------------------------------------------------------------------------
# Seq2Seq forward: host glue reproduces the reference semantics (teacher
# forcing draws, output_index bookkeeping with the per-batch break on token 3)
# with a single device->host sync at the end.
# ----------------------------------------------------------------------------
def seq2seq_forward(src, trg, teacher_forcing_ratio, params):
    trg_len, batch = trg.shape
    vocab = params["dec_wout"].shape[1]
    steps = trg_len - 1

    # Pre-draw the teacher-forcing decisions in the same order as the
    # reference Python loop (one random.random() per step t = 1..trg_len-1).
    tf_mask = np.zeros((trg_len,), dtype=np.int32)
    for t in range(1, trg_len):
        tf_mask[t] = 1 if random.random() < teacher_forcing_ratio else 0
    tf_mask = jnp.asarray(tf_mask)

    # Encoder.
    h0, c0 = run_encoder(src, params["enc_wih"], params["enc_whh"],
                         params["enc_b"])

    # Pre-projected embedding table (emb @ Wih) computed once outside the
    # kernel; the teacher-path per-step projections are a gather of it.
    emb_proj = jnp.dot(params["dec_emb"].astype(jnp.bfloat16),
                       params["dec_wih"],
                       preferred_element_type=jnp.float32)     # (vocab, 4*hid)
    x_teacher_proj = jnp.take(emb_proj, trg[:steps], axis=0)   # (steps, B, 4*hid)
    emb_proj_bf16 = emb_proj.astype(jnp.bfloat16)              # greedy feedback

    logits_seq = run_decoder_sequence(
        tf_mask, x_teacher_proj, h0, c0, emb_proj_bf16,
        params["dec_whh"], params["dec_b"],
        params["dec_wout"], params["dec_bout"])
    logits_seq = jax.block_until_ready(logits_seq)

    outputs = np.zeros((trg_len, batch, vocab), dtype=np.float32)
    outputs[1:] = np.asarray(logits_seq)                       # outputs[0] = 0

    # Host-side argmax (first maximal index, same as torch.argmax).
    best_np = np.argmax(outputs[1:], axis=-1)                  # (steps, batch)
    output_index = np.zeros((batch, trg_len), dtype=np.int64)
    for t in range(1, trg_len):
        for i, prediction in enumerate(best_np[t - 1]):
            if int(prediction) == 3:
                break                                          # same quirky break
            output_index[i][t - 1] = int(prediction)
    return outputs, output_index


if __name__ == "__main__":
    # Small but (8,128)-tile aligned shapes.
    SRC_LEN, TRG_LEN, BATCH = 12, 8, 8
    ENC_IN, HID, VOCAB, DEC_EMB = 128, 128, 128, 128

    key = jax.random.PRNGKey(0)
    ks = jax.random.split(key, 10)

    src = jax.random.normal(ks[0], (SRC_LEN, BATCH, ENC_IN), dtype=jnp.float32)
    trg = jax.random.randint(ks[1], (TRG_LEN, BATCH), 0, VOCAB, dtype=jnp.int32)

    s = 0.1
    # Gate order is (i, f, o, g): for a real nn.LSTM checkpoint, permute the
    # (i, f, g, o) gate blocks of W_ih / W_hh / biases host-side once, and
    # pre-sum b = b_ih + b_hh.  Weights are pre-transposed for x @ W.
    params = {
        "enc_wih": (s * jax.random.normal(ks[2], (ENC_IN, 4 * HID),
                                          jnp.float32)).astype(jnp.bfloat16),
        "enc_whh": (s * jax.random.normal(ks[3], (HID, 4 * HID),
                                          jnp.float32)).astype(jnp.bfloat16),
        "enc_b":   s * jax.random.normal(ks[4], (1, 4 * HID), jnp.float32),
        "dec_emb": s * jax.random.normal(ks[5], (VOCAB, DEC_EMB), jnp.float32),
        "dec_wih": (s * jax.random.normal(ks[6], (DEC_EMB, 4 * HID),
                                          jnp.float32)).astype(jnp.bfloat16),
        "dec_whh": (s * jax.random.normal(ks[7], (HID, 4 * HID),
                                          jnp.float32)).astype(jnp.bfloat16),
        "dec_b":   s * jax.random.normal(ks[8], (1, 4 * HID), jnp.float32),
        "dec_wout": (s * jax.random.normal(ks[9], (HID, VOCAB),
                                           jnp.float32)).astype(jnp.bfloat16),
        "dec_bout": jnp.zeros((1, VOCAB), jnp.float32),
    }

    random.seed(0)
    outputs, output_index = seq2seq_forward(src, trg, 0.75, params)

    assert outputs.shape == (TRG_LEN, BATCH, VOCAB)
    assert output_index.shape == (BATCH, TRG_LEN)
    assert np.isfinite(outputs).all()
    assert np.all(outputs[0] == 0.0)
    print("KERNEL_OK")
</pallas_src>

<mosaic_0001>
module attributes {stable_mosaic.version = 11 : i64} {
  func.func @encoder_kernel(%arg0: memref<96x128xbf16, #tpu.memory_space<vmem>>, %arg1: memref<128x512xbf16, #tpu.memory_space<vmem>>, %arg2: memref<128x512xbf16, #tpu.memory_space<vmem>>, %arg3: memref<1x512xf32, #tpu.memory_space<vmem>>, %arg4: memref<8x128xf32, #tpu.memory_space<vmem>>, %arg5: memref<8x128xf32, #tpu.memory_space<vmem>>, %arg6: memref<96x512xf32, #tpu.memory_space<vmem>>) attributes {dimension_semantics = [], scalar_prefetch = 0 : i64, scratch_operands = 1 : i64, tpu.core_type = #tpu.core_type<tc>} {
    %c0 = arith.constant 0 : index
    %c0_0 = arith.constant 0 : index
    %0 = vector.load %arg0[%c0, %c0_0] : memref<96x128xbf16, #tpu.memory_space<vmem>>, vector<96x128xbf16>
    %c0_1 = arith.constant 0 : index
    %c0_2 = arith.constant 0 : index
    %1 = vector.load %arg1[%c0_1, %c0_2] : memref<128x512xbf16, #tpu.memory_space<vmem>>, vector<128x512xbf16>
    %cst = arith.constant dense<0.000000e+00> : vector<96x512xf32>
    %2 = tpu.matmul %0, %1, %cst {dimension_numbers = #tpu.dot_dimension_numbers<[1], [0], [0], [1], [0, 0, 1, 1], [], []>} : vector<96x128xbf16>, vector<128x512xbf16>, vector<96x512xf32> -> vector<96x512xf32>
    %c0_3 = arith.constant 0 : index
    %c0_4 = arith.constant 0 : index
    %3 = vector.load %arg6[%c0_3, %c0_4] : memref<96x512xf32, #tpu.memory_space<vmem>>, vector<96x512xf32>
    tpu.vector_store %arg6[%c0_3, %c0_4], %2 {strides = array<i32>} : memref<96x512xf32, #tpu.memory_space<vmem>>, vector<96x512xf32>,
    %cst_5 = arith.constant 0.000000e+00 : f32
    %4 = vector.broadcast %cst_5 : f32 to vector<8x128xf32>
    %cst_6 = arith.constant 0.000000e+00 : f32
    %5 = vector.broadcast %cst_6 : f32 to vector<8x128xf32>
    %c0_i32 = arith.constant 0 : i32
    %c8_i32 = arith.constant 8 : i32
    %6 = arith.muli %c0_i32, %c8_i32 : i32
    %7 = tpu.assume_multiple %6, 8 : i32
    %8 = arith.index_cast %7 : i32 to index
    %c0_7 = arith.constant 0 : index
    %9 = vector.load %arg6[%8, %c0_7] : memref<96x512xf32, #tpu.memory_space<vmem>>, vector<8x512xf32>
    %10 = arith.truncf %4 : vector<8x128xf32> to vector<8x128xbf16>
    %c0_8 = arith.constant 0 : index
    %c0_9 = arith.constant 0 : index
    %11 = vector.load %arg2[%c0_8, %c0_9] : memref<128x512xbf16, #tpu.memory_space<vmem>>, vector<128x512xbf16>
    %cst_10 = arith.constant dense<0.000000e+00> : vector<8x512xf32>
    %12 = tpu.matmul %10, %11, %cst_10 {dimension_numbers = #tpu.dot_dimension_numbers<[1], [0], [0], [1], [0, 0, 1, 1], [], []>} : vector<8x128xbf16>, vector<128x512xbf16>, vector<8x512xf32> -> vector<8x512xf32>
    %13 = arith.addf %9, %12 : vector<8x512xf32>
    %c0_11 = arith.constant 0 : index
    %c0_12 = arith.constant 0 : index
    %14 = vector.load %arg3[%c0_11, %c0_12] : memref<1x512xf32, #tpu.memory_space<vmem>>, vector<1x512xf32>
    %15 = vector.broadcast %14 : vector<1x512xf32> to vector<8x512xf32>
    %16 = arith.addf %13, %15 : vector<8x512xf32>
    %17 = vector.extract_strided_slice %16 {offsets = [0, 0], sizes = [8, 384], strides = [1, 1]} : vector<8x512xf32> to vector<8x384xf32>
    %18 = arith.negf %17 : vector<8x384xf32>
    %19 = math.exp %18 : vector<8x384xf32>
    %cst_13 = arith.constant 1.000000e+00 : f32
    %20 = vector.broadcast %cst_13 : f32 to vector<8x384xf32>
    %21 = arith.addf %20, %19 : vector<8x384xf32>
    %22 = arith.divf %20, %21 : vector<8x384xf32>
    %23 = vector.extract_strided_slice %22 {offsets = [0, 0], sizes = [8, 128], strides = [1, 1]} : vector<8x384xf32> to vector<8x128xf32>
    %24 = vector.extract_strided_slice %22 {offsets = [0, 128], sizes = [8, 128], strides = [1, 1]} : vector<8x384xf32> to vector<8x128xf32>
    %25 = vector.extract_strided_slice %22 {offsets = [0, 256], sizes = [8, 128], strides = [1, 1]} : vector<8x384xf32> to vector<8x128xf32>
    %26 = vector.extract_strided_slice %16 {offsets = [0, 384], sizes = [8, 128], strides = [1, 1]} : vector<8x512xf32> to vector<8x128xf32>
    %27 = math.tanh %26 : vector<8x128xf32>
    %28 = arith.mulf %24, %5 : vector<8x128xf32>
    %29 = arith.mulf %23, %27 : vector<8x128xf32>
    %30 = arith.addf %28, %29 : vector<8x128xf32>
    %31 = math.tanh %30 : vector<8x128xf32>
    %32 = arith.mulf %25, %31 : vector<8x128xf32>
    %c1_i32 = arith.constant 1 : i32
    %c8_i32_14 = arith.constant 8 : i32
    %33 = arith.muli %c1_i32, %c8_i32_14 : i32
    %34 = tpu.assume_multiple %33, 8 : i32
    %35 = arith.index_cast %34 : i32 to index
    %c0_15 = arith.constant 0 : index
    %36 = vector.load %arg6[%35, %c0_15] : memref<96x512xf32, #tpu.memory_space<vmem>>, vector<8x512xf32>
    %37 = arith.truncf %32 : vector<8x128xf32> to vector<8x128xbf16>
    %c0_16 = arith.constant 0 : index
    %c0_17 = arith.constant 0 : index
    %38 = vector.load %arg2[%c0_16, %c0_17] : memref<128x512xbf16, #tpu.memory_space<vmem>>, vector<128x512xbf16>
    %cst_18 = arith.constant dense<0.000000e+00> : vector<8x512xf32>
    %39 = tpu.matmul %37, %38, %cst_18 {dimension_numbers = #tpu.dot_dimension_numbers<[1], [0], [0], [1], [0, 0, 1, 1], [], []>} : vector<8x128xbf16>, vector<128x512xbf16>, vector<8x512xf32> -> vector<8x512xf32>
    %40 = arith.addf %36, %39 : vector<8x512xf32>
    %c0_19 = arith.constant 0 : index
    %c0_20 = arith.constant 0 : index
    %41 = vector.load %arg3[%c0_19, %c0_20] : memref<1x512xf32, #tpu.memory_space<vmem>>, vector<1x512xf32>
    %42 = vector.broadcast %41 : vector<1x512xf32> to vector<8x512xf32>
    %43 = arith.addf %40, %42 : vector<8x512xf32>
    %44 = vector.extract_strided_slice %43 {offsets = [0, 0], sizes = [8, 384], strides = [1, 1]} : vector<8x512xf32> to vector<8x384xf32>
    %45 = arith.negf %44 : vector<8x384xf32>
    %46 = math.exp %45 : vector<8x384xf32>
    %cst_21 = arith.constant 1.000000e+00 : f32
    %47 = vector.broadcast %cst_21 : f32 to vector<8x384xf32>
    %48 = arith.addf %47, %46 : vector<8x384xf32>
    %49 = arith.divf %47, %48 : vector<8x384xf32>
    %50 = vector.extract_strided_slice %49 {offsets = [0, 0], sizes = [8, 128], strides = [1, 1]} : vector<8x384xf32> to vector<8x128xf32>
    %51 = vector.extract_strided_slice %49 {offsets = [0, 128], sizes = [8, 128], strides = [1, 1]} : vector<8x384xf32> to vector<8x128xf32>
    %52 = vector.extract_strided_slice %49 {offsets = [0, 256], sizes = [8, 128], strides = [1, 1]} : vector<8x384xf32> to vector<8x128xf32>
    %53 = vector.extract_strided_slice %43 {offsets = [0, 384], sizes = [8, 128], strides = [1, 1]} : vector<8x512xf32> to vector<8x128xf32>
    %54 = math.tanh %53 : vector<8x128xf32>
    %55 = arith.mulf %51, %30 : vector<8x128xf32>
    %56 = arith.mulf %50, %54 : vector<8x128xf32>
    %57 = arith.addf %55, %56 : vector<8x128xf32>
    %58 = math.tanh %57 : vector<8x128xf32>
    %59 = arith.mulf %52, %58 : vector<8x128xf32>
    %c2_i32 = arith.constant 2 : i32
    %c8_i32_22 = arith.constant 8 : i32
    %60 = arith.muli %c2_i32, %c8_i32_22 : i32
    %61 = tpu.assume_multiple %60, 8 : i32
    %62 = arith.index_cast %61 : i32 to index
    %c0_23 = arith.constant 0 : index
    %63 = vector.load %arg6[%62, %c0_23] : memref<96x512xf32, #tpu.memory_space<vmem>>, vector<8x512xf32>
    %64 = arith.truncf %59 : vector<8x128xf32> to vector<8x128xbf16>
    %c0_24 = arith.constant 0 : index
    %c0_25 = arith.constant 0 : index
    %65 = vector.load %arg2[%c0_24, %c0_25] : memref<128x512xbf16, #tpu.memory_space<vmem>>, vector<128x512xbf16>
    %cst_26 = arith.constant dense<0.000000e+00> : vector<8x512xf32>
    %66 = tpu.matmul %64, %65, %cst_26 {dimension_numbers = #tpu.dot_dimension_numbers<[1], [0], [0], [1], [0, 0, 1, 1], [], []>} : vector<8x128xbf16>, vector<128x512xbf16>, vector<8x512xf32> -> vector<8x512xf32>
    %67 = arith.addf %63, %66 : vector<8x512xf32>
    %c0_27 = arith.constant 0 : index
    %c0_28 = arith.constant 0 : index
    %68 = vector.load %arg3[%c0_27, %c0_28] : memref<1x512xf32, #tpu.memory_space<vmem>>, vector<1x512xf32>
    %69 = vector.broadcast %68 : vector<1x512xf32> to vector<8x512xf32>
    %70 = arith.addf %67, %69 : vector<8x512xf32>
    %71 = vector.extract_strided_slice %70 {offsets = [0, 0], sizes = [8, 384], strides = [1, 1]} : vector<8x512xf32> to vector<8x384xf32>
    %72 = arith.negf %71 : vector<8x384xf32>
    %73 = math.exp %72 : vector<8x384xf32>
    %cst_29 = arith.constant 1.000000e+00 : f32
    %74 = vector.broadcast %cst_29 : f32 to vector<8x384xf32>
    %75 = arith.addf %74, %73 : vector<8x384xf32>
    %76 = arith.divf %74, %75 : vector<8x384xf32>
    %77 = vector.extract_strided_slice %76 {offsets = [0, 0], sizes = [8, 128], strides = [1, 1]} : vector<8x384xf32> to vector<8x128xf32>
    %78 = vector.extract_strided_slice %76 {offsets = [0, 128], sizes = [8, 128], strides = [1, 1]} : vector<8x384xf32> to vector<8x128xf32>
    %79 = vector.extract_strided_slice %76 {offsets = [0, 256], sizes = [8, 128], strides = [1, 1]} : vector<8x384xf32> to vector<8x128xf32>
    %80 = vector.extract_strided_slice %70 {offsets = [0, 384], sizes = [8, 128], strides = [1, 1]} : vector<8x512xf32> to vector<8x128xf32>
    %81 = math.tanh %80 : vector<8x128xf32>
    %82 = arith.mulf %78, %57 : vector<8x128xf32>
    %83 = arith.mulf %77, %81 : vector<8x128xf32>
    %84 = arith.addf %82, %83 : vector<8x128xf32>
    %85 = math.tanh %84 : vector<8x128xf32>
    %86 = arith.mulf %79, %85 : vector<8x128xf32>
    %c3_i32 = arith.constant 3 : i32
    %c8_i32_30 = arith.constant 8 : i32
    %87 = arith.muli %c3_i32, %c8_i32_30 : i32
    %88 = tpu.assume_multiple %87, 8 : i32
    %89 = arith.index_cast %88 : i32 to index
    %c0_31 = arith.constant 0 : index
    %90 = vector.load %arg6[%89, %c0_31] : memref<96x512xf32, #tpu.memory_space<vmem>>, vector<8x512xf32>
    %91 = arith.truncf %86 : vector<8x128xf32> to vector<8x128xbf16>
    %c0_32 = arith.constant 0 : index
    %c0_33 = arith.constant 0 : index
    %92 = vector.load %arg2[%c0_32, %c0_33] : memref<128x512xbf16, #tpu.memory_space<vmem>>, vector<128x512xbf16>
    %cst_34 = arith.constant dense<0.000000e+00> : vector<8x512xf32>
    %93 = tpu.matmul %91, %92, %cst_34 {dimension_numbers = #tpu.dot_dimension_numbers<[1], [0], [0], [1], [0, 0, 1, 1], [], []>} : vector<8x128xbf16>, vector<128x512xbf16>, vector<8x512xf32> -> vector<8x512xf32>
    %94 = arith.addf %90, %93 : vector<8x512xf32>
    %c0_35 = arith.constant 0 : index
    %c0_36 = arith.constant 0 : index
    %95 = vector.load %arg3[%c0_35, %c0_36] : memref<1x512xf32, #tpu.memory_space<vmem>>, vector<1x512xf32>
    %96 = vector.broadcast %95 : vector<1x512xf32> to vector<8x512xf32>
    %97 = arith.addf %94, %96 : vector<8x512xf32>
    %98 = vector.extract_strided_slice %97 {offsets = [0, 0], sizes = [8, 384], strides = [1, 1]} : vector<8x512xf32> to vector<8x384xf32>
    %99 = arith.negf %98 : vector<8x384xf32>
    %100 = math.exp %99 : vector<8x384xf32>
    %cst_37 = arith.constant 1.000000e+00 : f32
    %101 = vector.broadcast %cst_37 : f32 to vector<8x384xf32>
    %102 = arith.addf %101, %100 : vector<8x384xf32>
    %103 = arith.divf %101, %102 : vector<8x384xf32>
    %104 = vector.extract_strided_slice %103 {offsets = [0, 0], sizes = [8, 128], strides = [1, 1]} : vector<8x384xf32> to vector<8x128xf32>
    %105 = vector.extract_strided_slice %103 {offsets = [0, 128], sizes = [8, 128], strides = [1, 1]} : vector<8x384xf32> to vector<8x128xf32>
    %106 = vector.extract_strided_slice %103 {offsets = [0, 256], sizes = [8, 128], strides = [1, 1]} : vector<8x384xf32> to vector<8x128xf32>
    %107 = vector.extract_strided_slice %97 {offsets = [0, 384], sizes = [8, 128], strides = [1, 1]} : vector<8x512xf32> to vector<8x128xf32>
    %108 = math.tanh %107 : vector<8x128xf32>
    %109 = arith.mulf %105, %84 : vector<8x128xf32>
    %110 = arith.mulf %104, %108 : vector<8x128xf32>
    %111 = arith.addf %109, %110 : vector<8x128xf32>
    %112 = math.tanh %111 : vector<8x128xf32>
    %113 = arith.mulf %106, %112 : vector<8x128xf32>
    %c4_i32 = arith.constant 4 : i32
    %c8_i32_38 = arith.constant 8 : i32
    %114 = arith.muli %c4_i32, %c8_i32_38 : i32
    %115 = tpu.assume_multiple %114, 8 : i32
    %116 = arith.index_cast %115 : i32 to index
    %c0_39 = arith.constant 0 : index
    %117 = vector.load %arg6[%116, %c0_39] : memref<96x512xf32, #tpu.memory_space<vmem>>, vector<8x512xf32>
    %118 = arith.truncf %113 : vector<8x128xf32> to vector<8x128xbf16>
    %c0_40 = arith.constant 0 : index
    %c0_41 = arith.constant 0 : index
    %119 = vector.load %arg2[%c0_40, %c0_41] : memref<128x512xbf16, #tpu.memory_space<vmem>>, vector<128x512xbf16>
    %cst_42 = arith.constant dense<0.000000e+00> : vector<8x512xf32>
    %120 = tpu.matmul %118, %119, %cst_42 {dimension_numbers = #tpu.dot_dimension_numbers<[1], [0], [0], [1], [0, 0, 1, 1], [], []>} : vector<8x128xbf16>, vector<128x512xbf16>, vector<8x512xf32> -> vector<8x512xf32>
    %121 = arith.addf %117, %120 : vector<8x512xf32>
    %c0_43 = arith.constant 0 : index
    %c0_44 = arith.constant 0 : index
    %122 = vector.load %arg3[%c0_43, %c0_44] : memref<1x512xf32, #tpu.memory_space<vmem>>, vector<1x512xf32>
    %123 = vector.broadcast %122 : vector<1x512xf32> to vector<8x512xf32>
    %124 = arith.addf %121, %123 : vector<8x512xf32>
    %125 = vector.extract_strided_slice %124 {offsets = [0, 0], sizes = [8, 384], strides = [1, 1]} : vector<8x512xf32> to vector<8x384xf32>
    %126 = arith.negf %125 : vector<8x384xf32>
    %127 = math.exp %126 : vector<8x384xf32>
    %cst_45 = arith.constant 1.000000e+00 : f32
    %128 = vector.broadcast %cst_45 : f32 to vector<8x384xf32>
    %129 = arith.addf %128, %127 : vector<8x384xf32>
    %130 = arith.divf %128, %129 : vector<8x384xf32>
    %131 = vector.extract_strided_slice %130 {offsets = [0, 0], sizes = [8, 128], strides = [1, 1]} : vector<8x384xf32> to vector<8x128xf32>
    %132 = vector.extract_strided_slice %130 {offsets = [0, 128], sizes = [8, 128], strides = [1, 1]} : vector<8x384xf32> to vector<8x128xf32>
    %133 = vector.extract_strided_slice %130 {offsets = [0, 256], sizes = [8, 128], strides = [1, 1]} : vector<8x384xf32> to vector<8x128xf32>
    %134 = vector.extract_strided_slice %124 {offsets = [0, 384], sizes = [8, 128], strides = [1, 1]} : vector<8x512xf32> to vector<8x128xf32>
    %135 = math.tanh %134 : vector<8x128xf32>
    %136 = arith.mulf %132, %111 : vector<8x128xf32>
    %137 = arith.mulf %131, %135 : vector<8x128xf32>
    %138 = arith.addf %136, %137 : vector<8x128xf32>
    %139 = math.tanh %138 : vector<8x128xf32>
    %140 = arith.mulf %133, %139 : vector<8x128xf32>
    %c5_i32 = arith.constant 5 : i32
    %c8_i32_46 = arith.constant 8 : i32
    %141 = arith.muli %c5_i32, %c8_i32_46 : i32
    %142 = tpu.assume_multiple %141, 8 : i32
    %143 = arith.index_cast %142 : i32 to index
    %c0_47 = arith.constant 0 : index
    %144 = vector.load %arg6[%143, %c0_47] : memref<96x512xf32, #tpu.memory_space<vmem>>, vector<8x512xf32>
    %145 = arith.truncf %140 : vector<8x128xf32> to vector<8x128xbf16>
    %c0_48 = arith.constant 0 : index
    %c0_49 = arith.constant 0 : index
    %146 = vector.load %arg2[%c0_48, %c0_49] : memref<128x512xbf16, #tpu.memory_space<vmem>>, vector<128x512xbf16>
    %cst_50 = arith.constant dense<0.000000e+00> : vector<8x512xf32>
    %147 = tpu.matmul %145, %146, %cst_50 {dimension_numbers = #tpu.dot_dimension_numbers<[1], [0], [0], [1], [0, 0, 1, 1], [], []>} : vector<8x128xbf16>, vector<128x512xbf16>, vector<8x512xf32> -> vector<8x512xf32>
    %148 = arith.addf %144, %147 : vector<8x512xf32>
    %c0_51 = arith.constant 0 : index
    %c0_52 = arith.constant 0 : index
    %149 = vector.load %arg3[%c0_51, %c0_52] : memref<1x512xf32, #tpu.memory_space<vmem>>, vector<1x512xf32>
    %150 = vector.broadcast %149 : vector<1x512xf32> to vector<8x512xf32>
    %151 = arith.addf %148, %150 : vector<8x512xf32>
    %152 = vector.extract_strided_slice %151 {offsets = [0, 0], sizes = [8, 384], strides = [1, 1]} : vector<8x512xf32> to vector<8x384xf32>
    %153 = arith.negf %152 : vector<8x384xf32>
    %154 = math.exp %153 : vector<8x384xf32>
    %cst_53 = arith.constant 1.000000e+00 : f32
    %155 = vector.broadcast %cst_53 : f32 to vector<8x384xf32>
    %156 = arith.addf %155, %154 : vector<8x384xf32>
    %157 = arith.divf %155, %156 : vector<8x384xf32>
    %158 = vector.extract_strided_slice %157 {offsets = [0, 0], sizes = [8, 128], strides = [1, 1]} : vector<8x384xf32> to vector<8x128xf32>
    %159 = vector.extract_strided_slice %157 {offsets = [0, 128], sizes = [8, 128], strides = [1, 1]} : vector<8x384xf32> to vector<8x128xf32>
    %160 = vector.extract_strided_slice %157 {offsets = [0, 256], sizes = [8, 128], strides = [1, 1]} : vector<8x384xf32> to vector<8x128xf32>
    %161 = vector.extract_strided_slice %151 {offsets = [0, 384], sizes = [8, 128], strides = [1, 1]} : vector<8x512xf32> to vector<8x128xf32>
    %162 = math.tanh %161 : vector<8x128xf32>
    %163 = arith.mulf %159, %138 : vector<8x128xf32>
    %164 = arith.mulf %158, %162 : vector<8x128xf32>
    %165 = arith.addf %163, %164 : vector<8x128xf32>
    %166 = math.tanh %165 : vector<8x128xf32>
    %167 = arith.mulf %160, %166 : vector<8x128xf32>
    %c6_i32 = arith.constant 6 : i32
    %c8_i32_54 = arith.constant 8 : i32
    %168 = arith.muli %c6_i32, %c8_i32_54 : i32
    %169 = tpu.assume_multiple %168, 8 : i32
    %170 = arith.index_cast %169 : i32 to index
    %c0_55 = arith.constant 0 : index
    %171 = vector.load %arg6[%170, %c0_55] : memref<96x512xf32, #tpu.memory_space<vmem>>, vector<8x512xf32>
    %172 = arith.truncf %167 : vector<8x128xf32> to vector<8x128xbf16>
    %c0_56 = arith.constant 0 : index
    %c0_57 = arith.constant 0 : index
    %173 = vector.load %arg2[%c0_56, %c0_57] : memref<128x512xbf16, #tpu.memory_space<vmem>>, vector<128x512xbf16>
    %cst_58 = arith.constant dense<0.000000e+00> : vector<8x512xf32>
    %174 = tpu.matmul %172, %173, %cst_58 {dimension_numbers = #tpu.dot_dimension_numbers<[1], [0], [0], [1], [0, 0, 1, 1], [], []>} : vector<8x128xbf16>, vector<128x512xbf16>, vector<8x512xf32> -> vector<8x512xf32>
    %175 = arith.addf %171, %174 : vector<8x512xf32>
    %c0_59 = arith.constant 0 : index
    %c0_60 = arith.constant 0 : index
    %176 = vector.load %arg3[%c0_59, %c0_60] : memref<1x512xf32, #tpu.memory_space<vmem>>, vector<1x512xf32>
    %177 = vector.broadcast %176 : vector<1x512xf32> to vector<8x512xf32>
    %178 = arith.addf %175, %177 : vector<8x512xf32>
    %179 = vector.extract_strided_slice %178 {offsets = [0, 0], sizes = [8, 384], strides = [1, 1]} : vector<8x512xf32> to vector<8x384xf32>
    %180 = arith.negf %179 : vector<8x384xf32>
    %181 = math.exp %180 : vector<8x384xf32>
    %cst_61 = arith.constant 1.000000e+00 : f32
    %182 = vector.broadcast %cst_61 : f32 to vector<8x384xf32>
    %183 = arith.addf %182, %181 : vector<8x384xf32>
    %184 = arith.divf %182, %183 : vector<8x384xf32>
    %185 = vector.extract_strided_slice %184 {offsets = [0, 0], sizes = [8, 128], strides = [1, 1]} : vector<8x384xf32> to vector<8x128xf32>
    %186 = vector.extract_strided_slice %184 {offsets = [0, 128], sizes = [8, 128], strides = [1, 1]} : vector<8x384xf32> to vector<8x128xf32>
    %187 = vector.extract_strided_slice %184 {offsets = [0, 256], sizes = [8, 128], strides = [1, 1]} : vector<8x384xf32> to vector<8x128xf32>
    %188 = vector.extract_strided_slice %178 {offsets = [0, 384], sizes = [8, 128], strides = [1, 1]} : vector<8x512xf32> to vector<8x128xf32>
    %189 = math.tanh %188 : vector<8x128xf32>
    %190 = arith.mulf %186, %165 : vector<8x128xf32>
    %191 = arith.mulf %185, %189 : vector<8x128xf32>
    %192 = arith.addf %190, %191 : vector<8x128xf32>
    %193 = math.tanh %192 : vector<8x128xf32>
    %194 = arith.mulf %187, %193 : vector<8x128xf32>
    %c7_i32 = arith.constant 7 : i32
    %c8_i32_62 = arith.constant 8 : i32
    %195 = arith.muli %c7_i32, %c8_i32_62 : i32
    %196 = tpu.assume_multiple %195, 8 : i32
    %197 = arith.index_cast %196 : i32 to index
    %c0_63 = arith.constant 0 : index
    %198 = vector.load %arg6[%197, %c0_63] : memref<96x512xf32, #tpu.memory_space<vmem>>, vector<8x512xf32>
    %199 = arith.truncf %194 : vector<8x128xf32> to vector<8x128xbf16>
    %c0_64 = arith.constant 0 : index
    %c0_65 = arith.constant 0 : index
    %200 = vector.load %arg2[%c0_64, %c0_65] : memref<128x512xbf16, #tpu.memory_space<vmem>>, vector<128x512xbf16>
    %cst_66 = arith.constant dense<0.000000e+00> : vector<8x512xf32>
    %201 = tpu.matmul %199, %200, %cst_66 {dimension_numbers = #tpu.dot_dimension_numbers<[1], [0], [0], [1], [0, 0, 1, 1], [], []>} : vector<8x128xbf16>, vector<128x512xbf16>, vector<8x512xf32> -> vector<8x512xf32>
    %202 = arith.addf %198, %201 : vector<8x512xf32>
    %c0_67 = arith.constant 0 : index
    %c0_68 = arith.constant 0 : index
    %203 = vector.load %arg3[%c0_67, %c0_68] : memref<1x512xf32, #tpu.memory_space<vmem>>, vector<1x512xf32>
    %204 = vector.broadcast %203 : vector<1x512xf32> to vector<8x512xf32>
    %205 = arith.addf %202, %204 : vector<8x512xf32>
    %206 = vector.extract_strided_slice %205 {offsets = [0, 0], sizes = [8, 384], strides = [1, 1]} : vector<8x512xf32> to vector<8x384xf32>
    %207 = arith.negf %206 : vector<8x384xf32>
    %208 = math.exp %207 : vector<8x384xf32>
    %cst_69 = arith.constant 1.000000e+00 : f32
    %209 = vector.broadcast %cst_69 : f32 to vector<8x384xf32>
    %210 = arith.addf %209, %208 : vector<8x384xf32>
    %211 = arith.divf %209, %210 : vector<8x384xf32>
    %212 = vector.extract_strided_slice %211 {offsets = [0, 0], sizes = [8, 128], strides = [1, 1]} : vector<8x384xf32> to vector<8x128xf32>
    %213 = vector.extract_strided_slice %211 {offsets = [0, 128], sizes = [8, 128], strides = [1, 1]} : vector<8x384xf32> to vector<8x128xf32>
    %214 = vector.extract_strided_slice %211 {offsets = [0, 256], sizes = [8, 128], strides = [1, 1]} : vector<8x384xf32> to vector<8x128xf32>
    %215 = vector.extract_strided_slice %205 {offsets = [0, 384], sizes = [8, 128], strides = [1, 1]} : vector<8x512xf32> to vector<8x128xf32>
    %216 = math.tanh %215 : vector<8x128xf32>
    %217 = arith.mulf %213, %192 : vector<8x128xf32>
    %218 = arith.mulf %212, %216 : vector<8x128xf32>
    %219 = arith.addf %217, %218 : vector<8x128xf32>
    %220 = math.tanh %219 : vector<8x128xf32>
    %221 = arith.mulf %214, %220 : vector<8x128xf32>
    %c8_i32_70 = arith.constant 8 : i32
    %c8_i32_71 = arith.constant 8 : i32
    %222 = arith.muli %c8_i32_70, %c8_i32_71 : i32
    %223 = tpu.assume_multiple %222, 8 : i32
    %224 = arith.index_cast %223 : i32 to index
    %c0_72 = arith.constant 0 : index
    %225 = vector.load %arg6[%224, %c0_72] : memref<96x512xf32, #tpu.memory_space<vmem>>, vector<8x512xf32>
    %226 = arith.truncf %221 : vector<8x128xf32> to vector<8x128xbf16>
    %c0_73 = arith.constant 0 : index
    %c0_74 = arith.constant 0 : index
    %227 = vector.load %arg2[%c0_73, %c0_74] : memref<128x512xbf16, #tpu.memory_space<vmem>>, vector<128x512xbf16>
    %cst_75 = arith.constant dense<0.000000e+00> : vector<8x512xf32>
    %228 = tpu.matmul %226, %227, %cst_75 {dimension_numbers = #tpu.dot_dimension_numbers<[1], [0], [0], [1], [0, 0, 1, 1], [], []>} : vector<8x128xbf16>, vector<128x512xbf16>, vector<8x512xf32> -> vector<8x512xf32>
    %229 = arith.addf %225, %228 : vector<8x512xf32>
    %c0_76 = arith.constant 0 : index
    %c0_77 = arith.constant 0 : index
    %230 = vector.load %arg3[%c0_76, %c0_77] : memref<1x512xf32, #tpu.memory_space<vmem>>, vector<1x512xf32>
    %231 = vector.broadcast %230 : vector<1x512xf32> to vector<8x512xf32>
    %232 = arith.addf %229, %231 : vector<8x512xf32>
    %233 = vector.extract_strided_slice %232 {offsets = [0, 0], sizes = [8, 384], strides = [1, 1]} : vector<8x512xf32> to vector<8x384xf32>
    %234 = arith.negf %233 : vector<8x384xf32>
    %235 = math.exp %234 : vector<8x384xf32>
    %cst_78 = arith.constant 1.000000e+00 : f32
    %236 = vector.broadcast %cst_78 : f32 to vector<8x384xf32>
    %237 = arith.addf %236, %235 : vector<8x384xf32>
    %238 = arith.divf %236, %237 : vector<8x384xf32>
    %239 = vector.extract_strided_slice %238 {offsets = [0, 0], sizes = [8, 128], strides = [1, 1]} : vector<8x384xf32> to vector<8x128xf32>
    %240 = vector.extract_strided_slice %238 {offsets = [0, 128], sizes = [8, 128], strides = [1, 1]} : vector<8x384xf32> to vector<8x128xf32>
    %241 = vector.extract_strided_slice %238 {offsets = [0, 256], sizes = [8, 128], strides = [1, 1]} : vector<8x384xf32> to vector<8x128xf32>
    %242 = vector.extract_strided_slice %232 {offsets = [0, 384], sizes = [8, 128], strides = [1, 1]} : vector<8x512xf32> to vector<8x128xf32>
    %243 = math.tanh %242 : vector<8x128xf32>
    %244 = arith.mulf %240, %219 : vector<8x128xf32>
    %245 = arith.mulf %239, %243 : vector<8x128xf32>
    %246 = arith.addf %244, %245 : vector<8x128xf32>
    %247 = math.tanh %246 : vector<8x128xf32>
    %248 = arith.mulf %241, %247 : vector<8x128xf32>
    %c9_i32 = arith.constant 9 : i32
    %c8_i32_79 = arith.constant 8 : i32
    %249 = arith.muli %c9_i32, %c8_i32_79 : i32
    %250 = tpu.assume_multiple %249, 8 : i32
    %251 = arith.index_cast %250 : i32 to index
    %c0_80 = arith.constant 0 : index
    %252 = vector.load %arg6[%251, %c0_80] : memref<96x512xf32, #tpu.memory_space<vmem>>, vector<8x512xf32>
    %253 = arith.truncf %248 : vector<8x128xf32> to vector<8x128xbf16>
    %c0_81 = arith.constant 0 : index
    %c0_82 = arith.constant 0 : index
    %254 = vector.load %arg2[%c0_81, %c0_82] : memref<128x512xbf16, #tpu.memory_space<vmem>>, vector<128x512xbf16>
    %cst_83 = arith.constant dense<0.000000e+00> : vector<8x512xf32>
    %255 = tpu.matmul %253, %254, %cst_83 {dimension_numbers = #tpu.dot_dimension_numbers<[1], [0], [0], [1], [0, 0, 1, 1], [], []>} : vector<8x128xbf16>, vector<128x512xbf16>, vector<8x512xf32> -> vector<8x512xf32>
    %256 = arith.addf %252, %255 : vector<8x512xf32>
    %c0_84 = arith.constant 0 : index
    %c0_85 = arith.constant 0 : index
    %257 = vector.load %arg3[%c0_84, %c0_85] : memref<1x512xf32, #tpu.memory_space<vmem>>, vector<1x512xf32>
    %258 = vector.broadcast %257 : vector<1x512xf32> to vector<8x512xf32>
    %259 = arith.addf %256, %258 : vector<8x512xf32>
    %260 = vector.extract_strided_slice %259 {offsets = [0, 0], sizes = [8, 384], strides = [1, 1]} : vector<8x512xf32> to vector<8x384xf32>
    %261 = arith.negf %260 : vector<8x384xf32>
    %262 = math.exp %261 : vector<8x384xf32>
    %cst_86 = arith.constant 1.000000e+00 : f32
    %263 = vector.broadcast %cst_86 : f32 to vector<8x384xf32>
    %264 = arith.addf %263, %262 : vector<8x384xf32>
    %265 = arith.divf %263, %264 : vector<8x384xf32>
    %266 = vector.extract_strided_slice %265 {offsets = [0, 0], sizes = [8, 128], strides = [1, 1]} : vector<8x384xf32> to vector<8x128xf32>
    %267 = vector.extract_strided_slice %265 {offsets = [0, 128], sizes = [8, 128], strides = [1, 1]} : vector<8x384xf32> to vector<8x128xf32>
    %268 = vector.extract_strided_slice %265 {offsets = [0, 256], sizes = [8, 128], strides = [1, 1]} : vector<8x384xf32> to vector<8x128xf32>
    %269 = vector.extract_strided_slice %259 {offsets = [0, 384], sizes = [8, 128], strides = [1, 1]} : vector<8x512xf32> to vector<8x128xf32>
    %270 = math.tanh %269 : vector<8x128xf32>
    %271 = arith.mulf %267, %246 : vector<8x128xf32>
    %272 = arith.mulf %266, %270 : vector<8x128xf32>
    %273 = arith.addf %271, %272 : vector<8x128xf32>
    %274 = math.tanh %273 : vector<8x128xf32>
    %275 = arith.mulf %268, %274 : vector<8x128xf32>
    %c10_i32 = arith.constant 10 : i32
    %c8_i32_87 = arith.constant 8 : i32
    %276 = arith.muli %c10_i32, %c8_i32_87 : i32
    %277 = tpu.assume_multiple %276, 8 : i32
    %278 = arith.index_cast %277 : i32 to index
    %c0_88 = arith.constant 0 : index
    %279 = vector.load %arg6[%278, %c0_88] : memref<96x512xf32, #tpu.memory_space<vmem>>, vector<8x512xf32>
    %280 = arith.truncf %275 : vector<8x128xf32> to vector<8x128xbf16>
    %c0_89 = arith.constant 0 : index
    %c0_90 = arith.constant 0 : index
    %281 = vector.load %arg2[%c0_89, %c0_90] : memref<128x512xbf16, #tpu.memory_space<vmem>>, vector<128x512xbf16>
    %cst_91 = arith.constant dense<0.000000e+00> : vector<8x512xf32>
    %282 = tpu.matmul %280, %281, %cst_91 {dimension_numbers = #tpu.dot_dimension_numbers<[1], [0], [0], [1], [0, 0, 1, 1], [], []>} : vector<8x128xbf16>, vector<128x512xbf16>, vector<8x512xf32> -> vector<8x512xf32>
    %283 = arith.addf %279, %282 : vector<8x512xf32>
    %c0_92 = arith.constant 0 : index
    %c0_93 = arith.constant 0 : index
    %284 = vector.load %arg3[%c0_92, %c0_93] : memref<1x512xf32, #tpu.memory_space<vmem>>, vector<1x512xf32>
    %285 = vector.broadcast %284 : vector<1x512xf32> to vector<8x512xf32>
    %286 = arith.addf %283, %285 : vector<8x512xf32>
    %287 = vector.extract_strided_slice %286 {offsets = [0, 0], sizes = [8, 384], strides = [1, 1]} : vector<8x512xf32> to vector<8x384xf32>
    %288 = arith.negf %287 : vector<8x384xf32>
    %289 = math.exp %288 : vector<8x384xf32>
    %cst_94 = arith.constant 1.000000e+00 : f32
    %290 = vector.broadcast %cst_94 : f32 to vector<8x384xf32>
    %291 = arith.addf %290, %289 : vector<8x384xf32>
    %292 = arith.divf %290, %291 : vector<8x384xf32>
    %293 = vector.extract_strided_slice %292 {offsets = [0, 0], sizes = [8, 128], strides = [1, 1]} : vector<8x384xf32> to vector<8x128xf32>
    %294 = vector.extract_strided_slice %292 {offsets = [0, 128], sizes = [8, 128], strides = [1, 1]} : vector<8x384xf32> to vector<8x128xf32>
    %295 = vector.extract_strided_slice %292 {offsets = [0, 256], sizes = [8, 128], strides = [1, 1]} : vector<8x384xf32> to vector<8x128xf32>
    %296 = vector.extract_strided_slice %286 {offsets = [0, 384], sizes = [8, 128], strides = [1, 1]} : vector<8x512xf32> to vector<8x128xf32>
    %297 = math.tanh %296 : vector<8x128xf32>
    %298 = arith.mulf %294, %273 : vector<8x128xf32>
    %299 = arith.mulf %293, %297 : vector<8x128xf32>
    %300 = arith.addf %298, %299 : vector<8x128xf32>
    %301 = math.tanh %300 : vector<8x128xf32>
    %302 = arith.mulf %295, %301 : vector<8x128xf32>
    %c11_i32 = arith.constant 11 : i32
    %c8_i32_95 = arith.constant 8 : i32
    %303 = arith.muli %c11_i32, %c8_i32_95 : i32
    %304 = tpu.assume_multiple %303, 8 : i32
    %305 = arith.index_cast %304 : i32 to index
    %c0_96 = arith.constant 0 : index
    %306 = vector.load %arg6[%305, %c0_96] : memref<96x512xf32, #tpu.memory_space<vmem>>, vector<8x512xf32>
    %307 = arith.truncf %302 : vector<8x128xf32> to vector<8x128xbf16>
    %c0_97 = arith.constant 0 : index
    %c0_98 = arith.constant 0 : index
    %308 = vector.load %arg2[%c0_97, %c0_98] : memref<128x512xbf16, #tpu.memory_space<vmem>>, vector<128x512xbf16>
    %cst_99 = arith.constant dense<0.000000e+00> : vector<8x512xf32>
    %309 = tpu.matmul %307, %308, %cst_99 {dimension_numbers = #tpu.dot_dimension_numbers<[1], [0], [0], [1], [0, 0, 1, 1], [], []>} : vector<8x128xbf16>, vector<128x512xbf16>, vector<8x512xf32> -> vector<8x512xf32>
    %310 = arith.addf %306, %309 : vector<8x512xf32>
    %c0_100 = arith.constant 0 : index
    %c0_101 = arith.constant 0 : index
    %311 = vector.load %arg3[%c0_100, %c0_101] : memref<1x512xf32, #tpu.memory_space<vmem>>, vector<1x512xf32>
    %312 = vector.broadcast %311 : vector<1x512xf32> to vector<8x512xf32>
    %313 = arith.addf %310, %312 : vector<8x512xf32>
    %314 = vector.extract_strided_slice %313 {offsets = [0, 0], sizes = [8, 384], strides = [1, 1]} : vector<8x512xf32> to vector<8x384xf32>
    %315 = arith.negf %314 : vector<8x384xf32>
    %316 = math.exp %315 : vector<8x384xf32>
    %cst_102 = arith.constant 1.000000e+00 : f32
    %317 = vector.broadcast %cst_102 : f32 to vector<8x384xf32>
    %318 = arith.addf %317, %316 : vector<8x384xf32>
    %319 = arith.divf %317, %318 : vector<8x384xf32>
    %320 = vector.extract_strided_slice %319 {offsets = [0, 0], sizes = [8, 128], strides = [1, 1]} : vector<8x384xf32> to vector<8x128xf32>
    %321 = vector.extract_strided_slice %319 {offsets = [0, 128], sizes = [8, 128], strides = [1, 1]} : vector<8x384xf32> to vector<8x128xf32>
    %322 = vector.extract_strided_slice %319 {offsets = [0, 256], sizes = [8, 128], strides = [1, 1]} : vector<8x384xf32> to vector<8x128xf32>
    %323 = vector.extract_strided_slice %313 {offsets = [0, 384], sizes = [8, 128], strides = [1, 1]} : vector<8x512xf32> to vector<8x128xf32>
    %324 = math.tanh %323 : vector<8x128xf32>
    %325 = arith.mulf %321, %300 : vector<8x128xf32>
    %326 = arith.mulf %320, %324 : vector<8x128xf32>
    %327 = arith.addf %325, %326 : vector<8x128xf32>
    %328 = math.tanh %327 : vector<8x128xf32>
    %329 = arith.mulf %322, %328 : vector<8x128xf32>
    %c12_i32 = arith.constant 12 : i32
    %c0_103 = arith.constant 0 : index
    %c0_104 = arith.constant 0 : index
    %330 = vector.load %arg4[%c0_103, %c0_104] : memref<8x128xf32, #tpu.memory_space<vmem>>, vector<8x128xf32>
    tpu.vector_store %arg4[%c0_103, %c0_104], %329 {strides = array<i32>} : memref<8x128xf32, #tpu.memory_space<vmem>>, vector<8x128xf32>,
    %c0_105 = arith.constant 0 : index
    %c0_106 = arith.constant 0 : index
    %331 = vector.load %arg5[%c0_105, %c0_106] : memref<8x128xf32, #tpu.memory_space<vmem>>, vector<8x128xf32>
    tpu.vector_store %arg5[%c0_105, %c0_106], %327 {strides = array<i32>} : memref<8x128xf32, #tpu.memory_space<vmem>>, vector<8x128xf32>,
    return
  }
}

</mosaic_0001>

<llo_original>
// kernel: tpu_custom_call.1
$region0: #{tpu_custom_call.1}
  #allocation0 [shape = 'u32[]', space=smem, size = 0x4, offset = 0x4, fixed_abs, tag = 'smem constant byte address 0x4 - core index']
  #allocation1 [shape = 'u32[72,128]{1,0:T(1,128)}', space=vmem, size = 0x9000, scoped, tag = 'internal scratch']
  #allocation2 [shape = 'f32[96,512]{1,0:T(8,128)}', space=vmem, size = 0x30000, scoped, tag = 'scratch operand']
  %s0 = inlined_call_operand.hbm [shape: bf16[96,128], index: 0, kind: input, shape index: {}]
  %s1 = inlined_call_operand.hbm [shape: bf16[128,512], index: 1, kind: input, shape index: {}]
  %s2 = inlined_call_operand.hbm [shape: bf16[128,512], index: 2, kind: input, shape index: {}]
  %s3 = inlined_call_operand.hbm [shape: f32[1,512], index: 3, kind: input, shape index: {}]
  %s4 = inlined_call_operand.hbm [shape: f32[8,128], index: 4, kind: output, shape index: {0}]
  %s5 = inlined_call_operand.hbm [shape: f32[8,128], index: 5, kind: output, shape index: {1}]
  %6 = xla_tuple %s4, %s5
  %s7 = sld [smem:[#allocation0]]
  $region50: #{tpu_custom_call.1} parent=0
    _
  %s9 = ssub.s32 1, %s7
  %s10 = scalar_select 0, %s9, %s7
  $region1: #{tpu_custom_call.1} parent=0
    #allocation3 [shape = 'u8[24576]{0}', space=vmem, size = 0x6000, scoped, tag = 'input window, operand 0, single buffered']
    #allocation4 [shape = 's32[1]{0}', space=sflag, size = 0x4, scoped, tag = 'scoped memory for tpu_custom_call.1']
    #allocation5 [shape = 's32[1]{0}', space=sflag, size = 0x4, scoped, tag = 'scoped memory for tpu_custom_call.1']
    #allocation6 [shape = 'u8[131072]{0}', space=vmem, size = 0x20000, scoped, tag = 'input window, operand 1, single buffered']
    #allocation7 [shape = 's32[1]{0}', space=sflag, size = 0x4, scoped, tag = 'scoped memory for tpu_custom_call.1']
    #allocation8 [shape = 'u8[131072]{0}', space=vmem, size = 0x20000, scoped, tag = 'input window, operand 2, single buffered']
    #allocation9 [shape = 'u8[2048]{0}', space=vmem, size = 0x800, scoped, tag = 'input window, operand 3, single buffered']
    #allocation10 [shape = 's32[1]{0}', space=sflag, size = 0x4, scoped, tag = 'scoped memory for tpu_custom_call.1']
    #allocation11 [shape = 'u8[4096]{0}', space=vmem, size = 0x1000, scoped, tag = 'output window, operand 0, single buffered']
    #allocation12 [shape = 'u8[4096]{0}', space=vmem, size = 0x1000, scoped, tag = 'output window, operand 1, single buffered']
    #allocation13 [shape = 's32[1]{0}', space=sflag, size = 0x4, scoped, tag = 'scoped memory for tpu_custom_call.1']
    %11 = vsyncpa [#allocation4], 0
    %12 = vsyncpa [#allocation7], 0
    %13 = vsyncpa [#allocation10], 0
    %14 = vsyncpa [#allocation5], 0
    %15 = vsyncpa [#allocation13], 0
    // Predicated region
    $region2: #{tpu_custom_call.1} parent=1 // pred_check
      _
    $region3: #{tpu_custom_call.1} parent=1 // pred_check_branch
      %17 = sbr.rel (0) target = $region5
    $region4: #{tpu_custom_call.1} parent=1 // pred_region
      %19 = vsyncadd [#allocation4], 0
      %s20 = sshll.u32 %s0, 4
      %s21 = int_to_ptr.hbm [resolvable:$true] %s20
      %s22 = sshll.u32 [#allocation3], 4
      %s23 = int_to_ptr.vmem [resolvable:$true] %s22
      %28 = dma.hbm_to_vmem [thread:$0]  %s21, 768, %s23, [#allocation4], 64, 64, 4
    $region5: #{tpu_custom_call.1} parent=1 // pred_fallthru
      _
    // Predicated region
    $region6: #{tpu_custom_call.1} parent=1 // pred_check
      _
    $region7: #{tpu_custom_call.1} parent=1 // pred_check_branch
      %30 = sbr.rel (0) target = $region9
    $region8: #{tpu_custom_call.1} parent=1 // pred_region
      %32 = vsyncadd [#allocation7], 0
      %s33 = sshll.u32 %s1, 4
      %s34 = int_to_ptr.hbm [resolvable:$true] %s33
      %s35 = sshll.u32 [#allocation6], 4
      %s36 = int_to_ptr.vmem [resolvable:$true] %s35
      %41 = dma.hbm_to_vmem [thread:$0]  %s34, 4096, %s36, [#allocation7], 256, 256, 16
    $region9: #{tpu_custom_call.1} parent=1 // pred_fallthru
      _
    // Predicated region
    $region10: #{tpu_custom_call.1} parent=1 // pred_check
      _
    $region11: #{tpu_custom_call.1} parent=1 // pred_check_branch
      %43 = sbr.rel (0) target = $region13
    $region12: #{tpu_custom_call.1} parent=1 // pred_region
      %45 = vsyncadd [#allocation7], 0
      %s46 = sshll.u32 %s2, 4
      %s47 = int_to_ptr.hbm [resolvable:$true] %s46
      %s48 = sshll.u32 [#allocation8], 4
      %s49 = int_to_ptr.vmem [resolvable:$true] %s48
      %54 = dma.hbm_to_vmem [thread:$0]  %s47, 4096, %s49, [#allocation7], 256, 256, 16
    $region13: #{tpu_custom_call.1} parent=1 // pred_fallthru
      _
    // Predicated region
    $region14: #{tpu_custom_call.1} parent=1 // pred_check
      _
    $region15: #{tpu_custom_call.1} parent=1 // pred_check_branch
      %56 = sbr.rel (0) target = $region17
    $region16: #{tpu_custom_call.1} parent=1 // pred_region
      %58 = vsyncadd [#allocation10], 0
      %s60 = sshll.u32 %s3, 4
      %s61 = int_to_ptr.hbm [resolvable:$true] %s60
      %s62 = sshll.u32 [#allocation9], 4
      %s63 = int_to_ptr.vmem [resolvable:$true] %s62
      %65 = dma.hbm_to_vmem [thread:$0]  %s61, 64, %s63, [#allocation10]
    $region17: #{tpu_custom_call.1} parent=1 // pred_fallthru
      _
    // Predicated region
    $region18: #{tpu_custom_call.1} parent=1 // pred_check
      _
    $region19: #{tpu_custom_call.1} parent=1 // pred_check_branch
      %67 = sbr.rel (0) target = $region21
    $region20: #{tpu_custom_call.1} parent=1 // pred_region
      %69 = dma.done [#allocation4], 768
    $region21: #{tpu_custom_call.1} parent=1 // pred_fallthru
      _
    // Predicated region
    $region22: #{tpu_custom_call.1} parent=1 // pred_check
      _
    $region23: #{tpu_custom_call.1} parent=1 // pred_check_branch
      %71 = sbr.rel (0) target = $region25
    $region24: #{tpu_custom_call.1} parent=1 // pred_region
      %73 = dma.done [#allocation7], 4096
    $region25: #{tpu_custom_call.1} parent=1 // pred_fallthru
      _
    // Predicated region
    $region26: #{tpu_custom_call.1} parent=1 // pred_check
      _
    $region27: #{tpu_custom_call.1} parent=1 // pred_check_branch
      %75 = sbr.rel (0) target = $region29
    $region28: #{tpu_custom_call.1} parent=1 // pred_region
      %77 = dma.done [#allocation7], 4096
    $region29: #{tpu_custom_call.1} parent=1 // pred_fallthru
      _
    // Predicated region
    $region30: #{tpu_custom_call.1} parent=1 // pred_check
      _
    $region31: #{tpu_custom_call.1} parent=1 // pred_check_branch
      %79 = sbr.rel (0) target = $region33
    $region32: #{tpu_custom_call.1} parent=1 // pred_region
      %81 = dma.done [#allocation10], 64
    $region33: #{tpu_custom_call.1} parent=1 // pred_fallthru
      _
    %v83 = vld [vmem:[#allocation3] sm:$0xf]
    %v84 = vld [vmem:[#allocation3 + $0x4] sm:$0xf]
    %v85 = vld [vmem:[#allocation3 + $0x8] sm:$0xf]
    %v86 = vld [vmem:[#allocation3 + $0xc] sm:$0xf]
    %v87 = vld [vmem:[#allocation3 + $0x10] sm:$0xf]
    %v88 = vld [vmem:[#allocation3 + $0x14] sm:$0xf]
    %v89 = vld [vmem:[#allocation3 + $0x18] sm:$0xf]
    %v90 = vld [vmem:[#allocation3 + $0x1c] sm:$0xf]
    %v91 = vld [vmem:[#allocation3 + $0x20] sm:$0xf]
    %v92 = vld [vmem:[#allocation3 + $0x24] sm:$0xf]
    %v93 = vld [vmem:[#allocation3 + $0x28] sm:$0xf]
    %v94 = vld [vmem:[#allocation3 + $0x2c] sm:$0xf]
    %v95 = vld [vmem:[#allocation6] sm:$0xff]
    %v96 = vld [vmem:[#allocation6 + $0x8] sm:$0xff]
    %v97 = vld [vmem:[#allocation6 + $0x10] sm:$0xff]
    %v98 = vld [vmem:[#allocation6 + $0x18] sm:$0xff]
    %v99 = vld [vmem:[#allocation6 + $0x20] sm:$0xff]
    %v100 = vld [vmem:[#allocation6 + $0x28] sm:$0xff]
    %v101 = vld [vmem:[#allocation6 + $0x30] sm:$0xff]
    %v102 = vld [vmem:[#allocation6 + $0x38] sm:$0xff]
    %v103 = vld [vmem:[#allocation6 + $0x40] sm:$0xff]
    %v104 = vld [vmem:[#allocation6 + $0x48] sm:$0xff]
    %v105 = vld [vmem:[#allocation6 + $0x50] sm:$0xff]
    %v106 = vld [vmem:[#allocation6 + $0x58] sm:$0xff]
    %v107 = vld [vmem:[#allocation6 + $0x60] sm:$0xff]
    %v108 = vld [vmem:[#allocation6 + $0x68] sm:$0xff]
    %v109 = vld [vmem:[#allocation6 + $0x70] sm:$0xff]
    %v110 = vld [vmem:[#allocation6 + $0x78] sm:$0xff]
    %v111 = vld [vmem:[#allocation6 + $0x80] sm:$0xff]
    %v112 = vld [vmem:[#allocation6 + $0x88] sm:$0xff]
    %v113 = vld [vmem:[#allocation6 + $0x90] sm:$0xff]
    %v114 = vld [vmem:[#allocation6 + $0x98] sm:$0xff]
    %v115 = vld [vmem:[#allocation6 + $0xa0] sm:$0xff]
    %v116 = vld [vmem:[#allocation6 + $0xa8] sm:$0xff]
    %v117 = vld [vmem:[#allocation6 + $0xb0] sm:$0xff]
    %v118 = vld [vmem:[#allocation6 + $0xb8] sm:$0xff]
    %v119 = vld [vmem:[#allocation6 + $0xc0] sm:$0xff]
    %v120 = vld [vmem:[#allocation6 + $0xc8] sm:$0xff]
    %v121 = vld [vmem:[#allocation6 + $0xd0] sm:$0xff]
    %v122 = vld [vmem:[#allocation6 + $0xd8] sm:$0xff]
    %v123 = vld [vmem:[#allocation6 + $0xe0] sm:$0xff]
    %v124 = vld [vmem:[#allocation6 + $0xe8] sm:$0xff]
    %v125 = vld [vmem:[#allocation6 + $0xf0] sm:$0xff]
    %v126 = vld [vmem:[#allocation6 + $0xf8] sm:$0xff]
    %v139 = vunpack.c.l.b16 %v83
    %v140 = vunpack.c.l.b16 %v84
    %v141 = vunpack.c.l.b16 %v85
    %v142 = vunpack.c.l.b16 %v86
    %v143 = vunpack.c.l.b16 %v87
    %v144 = vunpack.c.l.b16 %v88
    %v145 = vunpack.c.l.b16 %v89
    %v146 = vunpack.c.l.b16 %v90
    %v147 = vunpack.c.l.b16 %v91
    %v148 = vunpack.c.l.b16 %v92
    %v149 = vunpack.c.l.b16 %v93
    %v150 = vunpack.c.l.b16 %v94
    %v151 = vpack.c.b16 %v140, %v139
    %v152 = vpack.c.b16 %v142, %v141
    %v153 = vpack.c.b16 %v144, %v143
    %v154 = vpack.c.b16 %v146, %v145
    %v155 = vpack.c.b16 %v148, %v147
    %v156 = vpack.c.b16 %v150, %v149
    %v195 = vunpack.c.l.b16 %v95
    %v196 = vunpack.c.h.b16 %v95
    %v197 = vunpack.c.l.b16 %v96
    %v198 = vunpack.c.h.b16 %v96
    %v199 = vunpack.c.l.b16 %v97
    %v200 = vunpack.c.h.b16 %v97
    %v201 = vunpack.c.l.b16 %v98
    %v202 = vunpack.c.h.b16 %v98
    %v203 = vunpack.c.l.b16 %v99
    %v204 = vunpack.c.h.b16 %v99
    %v205 = vunpack.c.l.b16 %v100
    %v206 = vunpack.c.h.b16 %v100
    %v207 = vunpack.c.l.b16 %v101
    %v208 = vunpack.c.h.b16 %v101
    %v209 = vunpack.c.l.b16 %v102
    %v210 = vunpack.c.h.b16 %v102
    %v211 = vunpack.c.l.b16 %v103
    %v212 = vunpack.c.h.b16 %v103
    %v213 = vunpack.c.l.b16 %v104
    %v214 = vunpack.c.h.b16 %v104
    %v215 = vunpack.c.l.b16 %v105
    %v216 = vunpack.c.h.b16 %v105
    %v217 = vunpack.c.l.b16 %v106
    %v218 = vunpack.c.h.b16 %v106
    %v219 = vunpack.c.l.b16 %v107
    %v220 = vunpack.c.h.b16 %v107
    %v221 = vunpack.c.l.b16 %v108
    %v222 = vunpack.c.h.b16 %v108
    %v223 = vunpack.c.l.b16 %v109
    %v224 = vunpack.c.h.b16 %v109
    %v225 = vunpack.c.l.b16 %v110
    %v226 = vunpack.c.h.b16 %v110
    %v227 = vunpack.c.l.b16 %v111
    %v228 = vunpack.c.h.b16 %v111
    %v229 = vunpack.c.l.b16 %v112
    %v230 = vunpack.c.h.b16 %v112
    %v231 = vunpack.c.l.b16 %v113
    %v232 = vunpack.c.h.b16 %v113
    %v233 = vunpack.c.l.b16 %v114
    %v234 = vunpack.c.h.b16 %v114
    %v235 = vunpack.c.l.b16 %v115
    %v236 = vunpack.c.h.b16 %v115
    %v237 = vunpack.c.l.b16 %v116
    %v238 = vunpack.c.h.b16 %v116
    %v239 = vunpack.c.l.b16 %v117
    %v240 = vunpack.c.h.b16 %v117
    %v241 = vunpack.c.l.b16 %v118
    %v242 = vunpack.c.h.b16 %v118
    %v243 = vunpack.c.l.b16 %v119
    %v244 = vunpack.c.h.b16 %v119
    %v245 = vunpack.c.l.b16 %v120
    %v246 = vunpack.c.h.b16 %v120
    %v247 = vunpack.c.l.b16 %v121
    %v248 = vunpack.c.h.b16 %v121
    %v249 = vunpack.c.l.b16 %v122
    %v250 = vunpack.c.h.b16 %v122
    %v251 = vunpack.c.l.b16 %v123
    %v252 = vunpack.c.h.b16 %v123
    %v253 = vunpack.c.l.b16 %v124
    %v254 = vunpack.c.h.b16 %v124
    %v255 = vunpack.c.l.b16 %v125
    %v256 = vunpack.c.h.b16 %v125
    %v257 = vunpack.c.l.b16 %v126
    %v258 = vunpack.c.h.b16 %v126
    %v259 = vpack.c.b16 %v199, %v195
    %v260 = vpack.c.b16 %v200, %v196
    %v261 = vpack.c.b16 %v201, %v197
    %v262 = vpack.c.b16 %v202, %v198
    %v263 = vpack.c.b16 %v207, %v203
    %v264 = vpack.c.b16 %v208, %v204
    %v265 = vpack.c.b16 %v209, %v205
    %v266 = vpack.c.b16 %v210, %v206
    %v267 = vpack.c.b16 %v215, %v211
    %v268 = vpack.c.b16 %v216, %v212
    %v269 = vpack.c.b16 %v217, %v213
    %v270 = vpack.c.b16 %v218, %v214
    %v271 = vpack.c.b16 %v223, %v219
    %v272 = vpack.c.b16 %v224, %v220
    %v273 = vpack.c.b16 %v225, %v221
    %v274 = vpack.c.b16 %v226, %v222
    %v275 = vpack.c.b16 %v231, %v227
    %v276 = vpack.c.b16 %v232, %v228
    %v277 = vpack.c.b16 %v233, %v229
    %v278 = vpack.c.b16 %v234, %v230
    %v279 = vpack.c.b16 %v239, %v235
    %v280 = vpack.c.b16 %v240, %v236
    %v281 = vpack.c.b16 %v241, %v237
    %v282 = vpack.c.b16 %v242, %v238
    %v283 = vpack.c.b16 %v247, %v243
    %v284 = vpack.c.b16 %v248, %v244
    %v285 = vpack.c.b16 %v249, %v245
    %v286 = vpack.c.b16 %v250, %v246
    %v287 = vpack.c.b16 %v255, %v251
    %v288 = vpack.c.b16 %v256, %v252
    %v289 = vpack.c.b16 %v257, %v253
    %v290 = vpack.c.b16 %v258, %v254
    %323 = vmatpush.bf16.msra.mxu0 %v287
    %324 = vmatpush.bf16.msra.mxu0 %v283
    %325 = vmatpush.bf16.msra.mxu0 %v279
    %326 = vmatpush.bf16.msra.mxu0 %v275
    %327 = vmatpush.bf16.msra.mxu0 %v271
    %328 = vmatpush.bf16.msra.mxu0 %v267
    %329 = vmatpush.bf16.msra.mxu0 %v263
    %330 = vmatpush.bf16.msra.mxu0 %v259
    %331 = vmatmul.bf16.gmra.mxu0 %v151
    %v332 = vpop.f32.mrf.mxu0
    %v333 = vadd.f32 0.0, %v332
    %v334 = vpop.f32.mrf.mxu0
    %v335 = vadd.f32 0.0, %v334
    %336 = vmatmul.bf16.gmra.mxu0 %v152
    %v337 = vpop.f32.mrf.mxu0
    %v338 = vadd.f32 0.0, %v337
    %v339 = vpop.f32.mrf.mxu0
    %v340 = vadd.f32 0.0, %v339
    %341 = vmatmul.bf16.gmra.mxu0 %v153
    %v342 = vpop.f32.mrf.mxu0
    %v343 = vadd.f32 0.0, %v342
    %v344 = vpop.f32.mrf.mxu0
    %v345 = vadd.f32 0.0, %v344
    %346 = vmatmul.bf16.gmra.mxu0 %v154
    %v347 = vpop.f32.mrf.mxu0
    %v348 = vadd.f32 0.0, %v347
    %v349 = vpop.f32.mrf.mxu0
    %v350 = vadd.f32 0.0, %v349
    %351 = vmatmul.bf16.gmra.mxu0 %v155
    %v352 = vpop.f32.mrf.mxu0
    %v353 = vadd.f32 0.0, %v352
    %v354 = vpop.f32.mrf.mxu0
    %v355 = vadd.f32 0.0, %v354
    %356 = vmatmul.bf16.gmra.mxu0 %v156
    %v357 = vpop.f32.mrf.mxu0
    %v358 = vadd.f32 0.0, %v357
    %v359 = vpop.f32.mrf.mxu0
    %v360 = vadd.f32 0.0, %v359
    %361 = vdwg.mxu0
    %362 = vmatpush.bf16.msra.mxu0 %v288
    %363 = vmatpush.bf16.msra.mxu0 %v284
    %364 = vmatpush.bf16.msra.mxu0 %v280
    %365 = vmatpush.bf16.msra.mxu0 %v276
    %366 = vmatpush.bf16.msra.mxu0 %v272
    %367 = vmatpush.bf16.msra.mxu0 %v268
    %368 = vmatpush.bf16.msra.mxu0 %v264
    %369 = vmatpush.bf16.msra.mxu0 %v260
    %370 = vmatmul.bf16.gmra.mxu0 %v151
    %v371 = vpop.f32.mrf.mxu0
    %v372 = vadd.f32 0.0, %v371
    %v373 = vpop.f32.mrf.mxu0
    %v374 = vadd.f32 0.0, %v373
    %375 = vmatmul.bf16.gmra.mxu0 %v152
    %v376 = vpop.f32.mrf.mxu0
    %v377 = vadd.f32 0.0, %v376
    %v378 = vpop.f32.mrf.mxu0
    %v379 = vadd.f32 0.0, %v378
    %380 = vmatmul.bf16.gmra.mxu0 %v153
    %v381 = vpop.f32.mrf.mxu0
    %v382 = vadd.f32 0.0, %v381
    %v383 = vpop.f32.mrf.mxu0
    %v384 = vadd.f32 0.0, %v383
    %385 = vmatmul.bf16.gmra.mxu0 %v154
    %v386 = vpop.f32.mrf.mxu0
    %v387 = vadd.f32 0.0, %v386
    %v388 = vpop.f32.mrf.mxu0
    %v389 = vadd.f32 0.0, %v388
    %390 = vmatmul.bf16.gmra.mxu0 %v155
    %v391 = vpop.f32.mrf.mxu0
    %v392 = vadd.f32 0.0, %v391
    %v393 = vpop.f32.mrf.mxu0
    %v394 = vadd.f32 0.0, %v393
    %395 = vmatmul.bf16.gmra.mxu0 %v156
    %v396 = vpop.f32.mrf.mxu0
    %v397 = vadd.f32 0.0, %v396
    %v398 = vpop.f32.mrf.mxu0
    %v399 = vadd.f32 0.0, %v398
    %400 = vdwg.mxu0
    %401 = vmatpush.bf16.msra.mxu0 %v289
    %402 = vmatpush.bf16.msra.mxu0 %v285
    %403 = vmatpush.bf16.msra.mxu0 %v281
    %404 = vmatpush.bf16.msra.mxu0 %v277
    %405 = vmatpush.bf16.msra.mxu0 %v273
    %406 = vmatpush.bf16.msra.mxu0 %v269
    %407 = vmatpush.bf16.msra.mxu0 %v265
    %408 = vmatpush.bf16.msra.mxu0 %v261
    %409 = vmatmul.bf16.gmra.mxu0 %v151
    %v410 = vpop.f32.mrf.mxu0
    %v411 = vadd.f32 0.0, %v410
    %v412 = vpop.f32.mrf.mxu0
    %v413 = vadd.f32 0.0, %v412
    %414 = vmatmul.bf16.gmra.mxu0 %v152
    %v415 = vpop.f32.mrf.mxu0
    %v416 = vadd.f32 0.0, %v415
    %v417 = vpop.f32.mrf.mxu0
    %v418 = vadd.f32 0.0, %v417
    %419 = vmatmul.bf16.gmra.mxu0 %v153
    %v420 = vpop.f32.mrf.mxu0
    %v421 = vadd.f32 0.0, %v420
    %v422 = vpop.f32.mrf.mxu0
    %v423 = vadd.f32 0.0, %v422
    %424 = vmatmul.bf16.gmra.mxu0 %v154
    %v425 = vpop.f32.mrf.mxu0
    %v426 = vadd.f32 0.0, %v425
    %v427 = vpop.f32.mrf.mxu0
    %v428 = vadd.f32 0.0, %v427
    %429 = vmatmul.bf16.gmra.mxu0 %v155
    %v430 = vpop.f32.mrf.mxu0
    %v431 = vadd.f32 0.0, %v430
    %v432 = vpop.f32.mrf.mxu0
    %v433 = vadd.f32 0.0, %v432
    %434 = vmatmul.bf16.gmra.mxu0 %v156
    %v435 = vpop.f32.mrf.mxu0
    %v436 = vadd.f32 0.0, %v435
    %v437 = vpop.f32.mrf.mxu0
    %v438 = vadd.f32 0.0, %v437
    %439 = vdwg.mxu0
    %440 = vmatpush.bf16.msra.mxu0 %v290
    %441 = vmatpush.bf16.msra.mxu0 %v286
    %442 = vmatpush.bf16.msra.mxu0 %v282
    %443 = vmatpush.bf16.msra.mxu0 %v278
    %444 = vmatpush.bf16.msra.mxu0 %v274
    %445 = vmatpush.bf16.msra.mxu0 %v270
    %446 = vmatpush.bf16.msra.mxu0 %v266
    %447 = vmatpush.bf16.msra.mxu0 %v262
    %448 = vmatmul.bf16.gmra.mxu0 %v151
    %v449 = vpop.f32.mrf.mxu0
    %v450 = vadd.f32 0.0, %v449
    %v451 = vpop.f32.mrf.mxu0
    %v452 = vadd.f32 0.0, %v451
    %453 = vmatmul.bf16.gmra.mxu0 %v152
    %v454 = vpop.f32.mrf.mxu0
    %v455 = vadd.f32 0.0, %v454
    %v456 = vpop.f32.mrf.mxu0
    %v457 = vadd.f32 0.0, %v456
    %458 = vmatmul.bf16.gmra.mxu0 %v153
    %v459 = vpop.f32.mrf.mxu0
    %v460 = vadd.f32 0.0, %v459
    %v461 = vpop.f32.mrf.mxu0
    %v462 = vadd.f32 0.0, %v461
    %463 = vmatmul.bf16.gmra.mxu0 %v154
    %v464 = vpop.f32.mrf.mxu0
    %v465 = vadd.f32 0.0, %v464
    %v466 = vpop.f32.mrf.mxu0
    %v467 = vadd.f32 0.0, %v466
    %468 = vmatmul.bf16.gmra.mxu0 %v155
    %v469 = vpop.f32.mrf.mxu0
    %v470 = vadd.f32 0.0, %v469
    %v471 = vpop.f32.mrf.mxu0
    %v472 = vadd.f32 0.0, %v471
    %473 = vmatmul.bf16.gmra.mxu0 %v156
    %v474 = vpop.f32.mrf.mxu0
    %v475 = vadd.f32 0.0, %v474
    %v476 = vpop.f32.mrf.mxu0
    %v477 = vadd.f32 0.0, %v476
    %478 = vdwg.mxu0
    %479 = vst [vmem:[#allocation2] sm:$0xff] %v333
    %480 = vst [vmem:[#allocation2 + $0x8] sm:$0xff] %v372
    %481 = vst [vmem:[#allocation2 + $0x10] sm:$0xff] %v411
    %482 = vst [vmem:[#allocation2 + $0x18] sm:$0xff] %v450
    %483 = vst [vmem:[#allocation2 + $0x20] sm:$0xff] %v335
    %484 = vst [vmem:[#allocation2 + $0x28] sm:$0xff] %v374
    %485 = vst [vmem:[#allocation2 + $0x30] sm:$0xff] %v413
    %486 = vst [vmem:[#allocation2 + $0x38] sm:$0xff] %v452
    %487 = vst [vmem:[#allocation2 + $0x40] sm:$0xff] %v338
    %488 = vst [vmem:[#allocation2 + $0x48] sm:$0xff] %v377
    %489 = vst [vmem:[#allocation2 + $0x50] sm:$0xff] %v416
    %490 = vst [vmem:[#allocation2 + $0x58] sm:$0xff] %v455
    %491 = vst [vmem:[#allocation2 + $0x60] sm:$0xff] %v340
    %492 = vst [vmem:[#allocation2 + $0x68] sm:$0xff] %v379
    %493 = vst [vmem:[#allocation2 + $0x70] sm:$0xff] %v418
    %494 = vst [vmem:[#allocation2 + $0x78] sm:$0xff] %v457
    %495 = vst [vmem:[#allocation2 + $0x80] sm:$0xff] %v343
    %496 = vst [vmem:[#allocation2 + $0x88] sm:$0xff] %v382
    %497 = vst [vmem:[#allocation2 + $0x90] sm:$0xff] %v421
    %498 = vst [vmem:[#allocation2 + $0x98] sm:$0xff] %v460
    %499 = vst [vmem:[#allocation2 + $0xa0] sm:$0xff] %v345
    %500 = vst [vmem:[#allocation2 + $0xa8] sm:$0xff] %v384
    %501 = vst [vmem:[#allocation2 + $0xb0] sm:$0xff] %v423
    %502 = vst [vmem:[#allocation2 + $0xb8] sm:$0xff] %v462
    %503 = vst [vmem:[#allocation2 + $0xc0] sm:$0xff] %v348
    %504 = vst [vmem:[#allocation2 + $0xc8] sm:$0xff] %v387
    %505 = vst [vmem:[#allocation2 + $0xd0] sm:$0xff] %v426
    %506 = vst [vmem:[#allocation2 + $0xd8] sm:$0xff] %v465
    %507 = vst [vmem:[#allocation2 + $0xe0] sm:$0xff] %v350
    %508 = vst [vmem:[#allocation2 + $0xe8] sm:$0xff] %v389
    %509 = vst [vmem:[#allocation2 + $0xf0] sm:$0xff] %v428
    %510 = vst [vmem:[#allocation2 + $0xf8] sm:$0xff] %v467
    %511 = vst [vmem:[#allocation2 + $0x100] sm:$0xff] %v353
    %512 = vst [vmem:[#allocation2 + $0x108] sm:$0xff] %v392
    %513 = vst [vmem:[#allocation2 + $0x110] sm:$0xff] %v431
    %514 = vst [vmem:[#allocation2 + $0x118] sm:$0xff] %v470
    %515 = vst [vmem:[#allocation2 + $0x120] sm:$0xff] %v355
    %516 = vst [vmem:[#allocation2 + $0x128] sm:$0xff] %v394
    %517 = vst [vmem:[#allocation2 + $0x130] sm:$0xff] %v433
    %518 = vst [vmem:[#allocation2 + $0x138] sm:$0xff] %v472
    %519 = vst [vmem:[#allocation2 + $0x140] sm:$0xff] %v358
    %520 = vst [vmem:[#allocation2 + $0x148] sm:$0xff] %v397
    %521 = vst [vmem:[#allocation2 + $0x150] sm:$0xff] %v436
    %522 = vst [vmem:[#allocation2 + $0x158] sm:$0xff] %v475
    %523 = vst [vmem:[#allocation2 + $0x160] sm:$0xff] %v360
    %524 = vst [vmem:[#allocation2 + $0x168] sm:$0xff] %v399
    %525 = vst [vmem:[#allocation2 + $0x170] sm:$0xff] %v438
    %526 = vst [vmem:[#allocation2 + $0x178] sm:$0xff] %v477
    %s527 = smul.u32 0, 4
    %s528 = smul.addr %s527, 8
    %s529 = scalar_lea.vmem [#allocation2], %s528
    %v530 = vld [vmem:[%s529] sm:$0xff]
    %v531 = vld [vmem:[%s529 + $0x8] sm:$0xff]
    %v532 = vld [vmem:[%s529 + $0x10] sm:$0xff]
    %v533 = vld [vmem:[%s529 + $0x18] sm:$0xff]
    %v534 = vld [vmem:[#allocation8] sm:$0xff]
    %v535 = vld [vmem:[#allocation8 + $0x8] sm:$0xff]
    %v536 = vld [vmem:[#allocation8 + $0x10] sm:$0xff]
    %v537 = vld [vmem:[#allocation8 + $0x18] sm:$0xff]
    %v538 = vld [vmem:[#allocation8 + $0x20] sm:$0xff]
    %v539 = vld [vmem:[#allocation8 + $0x28] sm:$0xff]
    %v540 = vld [vmem:[#allocation8 + $0x30] sm:$0xff]
    %v541 = vld [vmem:[#allocation8 + $0x38] sm:$0xff]
    %v542 = vld [vmem:[#allocation8 + $0x40] sm:$0xff]
    %v543 = vld [vmem:[#allocation8 + $0x48] sm:$0xff]
    %v544 = vld [vmem:[#allocation8 + $0x50] sm:$0xff]
    %v545 = vld [vmem:[#allocation8 + $0x58] sm:$0xff]
    %v546 = vld [vmem:[#allocation8 + $0x60] sm:$0xff]
    %v547 = vld [vmem:[#allocation8 + $0x68] sm:$0xff]
    %v548 = vld [vmem:[#allocation8 + $0x70] sm:$0xff]
    %v549 = vld [vmem:[#allocation8 + $0x78] sm:$0xff]
    %v550 = vld [vmem:[#allocation8 + $0x80] sm:$0xff]
    %v551 = vld [vmem:[#allocation8 + $0x88] sm:$0xff]
    %v552 = vld [vmem:[#allocation8 + $0x90] sm:$0xff]
    %v553 = vld [vmem:[#allocation8 + $0x98] sm:$0xff]
    %v554 = vld [vmem:[#allocation8 + $0xa0] sm:$0xff]
    %v555 = vld [vmem:[#allocation8 + $0xa8] sm:$0xff]
    %v556 = vld [vmem:[#allocation8 + $0xb0] sm:$0xff]
    %v557 = vld [vmem:[#allocation8 + $0xb8] sm:$0xff]
    %v558 = vld [vmem:[#allocation8 + $0xc0] sm:$0xff]
    %v559 = vld [vmem:[#allocation8 + $0xc8] sm:$0xff]
    %v560 = vld [vmem:[#allocation8 + $0xd0] sm:$0xff]
    %v561 = vld [vmem:[#allocation8 + $0xd8] sm:$0xff]
    %v562 = vld [vmem:[#allocation8 + $0xe0] sm:$0xff]
    %v563 = vld [vmem:[#allocation8 + $0xe8] sm:$0xff]
    %v564 = vld [vmem:[#allocation8 + $0xf0] sm:$0xff]
    %v565 = vld [vmem:[#allocation8 + $0xf8] sm:$0xff]
    %v598 = vunpack.c.l.b16 %v534
    %v599 = vunpack.c.h.b16 %v534
    %v600 = vunpack.c.l.b16 %v535
    %v601 = vunpack.c.h.b16 %v535
    %v602 = vunpack.c.l.b16 %v536
    %v603 = vunpack.c.h.b16 %v536
    %v604 = vunpack.c.l.b16 %v537
    %v605 = vunpack.c.h.b16 %v537
    %v606 = vunpack.c.l.b16 %v538
    %v607 = vunpack.c.h.b16 %v538
    %v608 = vunpack.c.l.b16 %v539
    %v609 = vunpack.c.h.b16 %v539
    %v610 = vunpack.c.l.b16 %v540
    %v611 = vunpack.c.h.b16 %v540
    %v612 = vunpack.c.l.b16 %v541
    %v613 = vunpack.c.h.b16 %v541
    %v614 = vunpack.c.l.b16 %v542
    %v615 = vunpack.c.h.b16 %v542
    %v616 = vunpack.c.l.b16 %v543
    %v617 = vunpack.c.h.b16 %v543
    %v618 = vunpack.c.l.b16 %v544
    %v619 = vunpack.c.h.b16 %v544
    %v620 = vunpack.c.l.b16 %v545
    %v621 = vunpack.c.h.b16 %v545
    %v622 = vunpack.c.l.b16 %v546
    %v623 = vunpack.c.h.b16 %v546
    %v624 = vunpack.c.l.b16 %v547
    %v625 = vunpack.c.h.b16 %v547
    %v626 = vunpack.c.l.b16 %v548
    %v627 = vunpack.c.h.b16 %v548
    %v628 = vunpack.c.l.b16 %v549
    %v629 = vunpack.c.h.b16 %v549
    %v630 = vunpack.c.l.b16 %v550
    %v631 = vunpack.c.h.b16 %v550
    %v632 = vunpack.c.l.b16 %v551
    %v633 = vunpack.c.h.b16 %v551
    %v634 = vunpack.c.l.b16 %v552
    %v635 = vunpack.c.h.b16 %v552
    %v636 = vunpack.c.l.b16 %v553
    %v637 = vunpack.c.h.b16 %v553
    %v638 = vunpack.c.l.b16 %v554
    %v639 = vunpack.c.h.b16 %v554
    %v640 = vunpack.c.l.b16 %v555
    %v641 = vunpack.c.h.b16 %v555
    %v642 = vunpack.c.l.b16 %v556
    %v643 = vunpack.c.h.b16 %v556
    %v644 = vunpack.c.l.b16 %v557
    %v645 = vunpack.c.h.b16 %v557
    %v646 = vunpack.c.l.b16 %v558
    %v647 = vunpack.c.h.b16 %v558
    %v648 = vunpack.c.l.b16 %v559
    %v649 = vunpack.c.h.b16 %v559
    %v650 = vunpack.c.l.b16 %v560
    %v651 = vunpack.c.h.b16 %v560
    %v652 = vunpack.c.l.b16 %v561
    %v653 = vunpack.c.h.b16 %v561
    %v654 = vunpack.c.l.b16 %v562
    %v655 = vunpack.c.h.b16 %v562
    %v656 = vunpack.c.l.b16 %v563
    %v657 = vunpack.c.h.b16 %v563
    %v658 = vunpack.c.l.b16 %v564
    %v659 = vunpack.c.h.b16 %v564
    %v660 = vunpack.c.l.b16 %v565
    %v661 = vunpack.c.h.b16 %v565
    %v662 = vpack.c.b16 %v602, %v598
    %v663 = vpack.c.b16 %v603, %v599
    %v664 = vpack.c.b16 %v604, %v600
    %v665 = vpack.c.b16 %v605, %v601
    %v666 = vpack.c.b16 %v610, %v606
    %v667 = vpack.c.b16 %v611, %v607
    %v668 = vpack.c.b16 %v612, %v608
    %v669 = vpack.c.b16 %v613, %v609
    %v670 = vpack.c.b16 %v618, %v614
    %v671 = vpack.c.b16 %v619, %v615
    %v672 = vpack.c.b16 %v620, %v616
    %v673 = vpack.c.b16 %v621, %v617
    %v674 = vpack.c.b16 %v626, %v622
    %v675 = vpack.c.b16 %v627, %v623
    %v676 = vpack.c.b16 %v628, %v624
    %v677 = vpack.c.b16 %v629, %v625
    %v678 = vpack.c.b16 %v634, %v630
    %v679 = vpack.c.b16 %v635, %v631
    %v680 = vpack.c.b16 %v636, %v632
    %v681 = vpack.c.b16 %v637, %v633
    %v682 = vpack.c.b16 %v642, %v638
    %v683 = vpack.c.b16 %v643, %v639
    %v684 = vpack.c.b16 %v644, %v640
    %v685 = vpack.c.b16 %v645, %v641
    %v686 = vpack.c.b16 %v650, %v646
    %v687 = vpack.c.b16 %v651, %v647
    %v688 = vpack.c.b16 %v652, %v648
    %v689 = vpack.c.b16 %v653, %v649
    %v690 = vpack.c.b16 %v658, %v654
    %v691 = vpack.c.b16 %v659, %v655
    %v692 = vpack.c.b16 %v660, %v656
    %v693 = vpack.c.b16 %v661, %v657
    %726 = vmatpush.bf16.msra.mxu0 %v690
    %727 = vmatpush.bf16.msra.mxu0 %v686
    %728 = vmatpush.bf16.msra.mxu0 %v682
    %729 = vmatpush.bf16.msra.mxu0 %v678
    %730 = vmatpush.bf16.msra.mxu0 %v674
    %731 = vmatpush.bf16.msra.mxu0 %v670
    %732 = vmatpush.bf16.msra.mxu0 %v666
    %733 = vmatpush.bf16.msra.mxu0 %v662
    %734 = vmatmul.bf16.gmra.mxu0 0
    %v735 = vpop.f32.mrf.mxu0
    %v736 = vadd.f32 0.0, %v735
    %v737 = vpop.f32.mrf.mxu0
    %738 = vdwg.mxu0
    %739 = vmatpush.bf16.msra.mxu0 %v691
    %740 = vmatpush.bf16.msra.mxu0 %v687
    %741 = vmatpush.bf16.msra.mxu0 %v683
    %742 = vmatpush.bf16.msra.mxu0 %v679
    %743 = vmatpush.bf16.msra.mxu0 %v675
    %744 = vmatpush.bf16.msra.mxu0 %v671
    %745 = vmatpush.bf16.msra.mxu0 %v667
    %746 = vmatpush.bf16.msra.mxu0 %v663
    %747 = vmatmul.bf16.gmra.mxu0 0
    %v748 = vpop.f32.mrf.mxu0
    %v749 = vadd.f32 0.0, %v748
    %v750 = vpop.f32.mrf.mxu0
    %751 = vdwg.mxu0
    %752 = vmatpush.bf16.msra.mxu0 %v692
    %753 = vmatpush.bf16.msra.mxu0 %v688
    %754 = vmatpush.bf16.msra.mxu0 %v684
    %755 = vmatpush.bf16.msra.mxu0 %v680
    %756 = vmatpush.bf16.msra.mxu0 %v676
    %757 = vmatpush.bf16.msra.mxu0 %v672
    %758 = vmatpush.bf16.msra.mxu0 %v668
    %759 = vmatpush.bf16.msra.mxu0 %v664
    %760 = vmatmul.bf16.gmra.mxu0 0
    %v761 = vpop.f32.mrf.mxu0
    %v762 = vadd.f32 0.0, %v761
    %v763 = vpop.f32.mrf.mxu0
    %764 = vdwg.mxu0
    %765 = vmatpush.bf16.msra.mxu0 %v693
    %766 = vmatpush.bf16.msra.mxu0 %v689
    %767 = vmatpush.bf16.msra.mxu0 %v685
    %768 = vmatpush.bf16.msra.mxu0 %v681
    %769 = vmatpush.bf16.msra.mxu0 %v677
    %770 = vmatpush.bf16.msra.mxu0 %v673
    %771 = vmatpush.bf16.msra.mxu0 %v669
    %772 = vmatpush.bf16.msra.mxu0 %v665
    %773 = vmatmul.bf16.gmra.mxu0 0
    %v774 = vpop.f32.mrf.mxu0
    %v775 = vadd.f32 0.0, %v774
    %v776 = vpop.f32.mrf.mxu0
    %777 = vdwg.mxu0
    %v778 = vadd.f32 %v530, %v736
    %v779 = vadd.f32 %v531, %v749
    %v780 = vadd.f32 %v532, %v762
    %v781 = vadd.f32 %v533, %v775
    %v782 = vld [vmem:[#allocation9] sm:$0xf]
    %v784 = vperm.slane %v782, 0
    %v785 = vperm.slane %v782, 1
    %v786 = vperm.slane %v782, 2
    %v787 = vperm.slane %v782, 3
    %v792 = vadd.f32 %v778, %v784
    %v793 = vadd.f32 %v779, %v785
    %v794 = vadd.f32 %v780, %v786
    %v795 = vadd.f32 %v781, %v787
    %v796 = vxor.u32 %v792, 2147483648
    %v797 = vxor.u32 %v793, 2147483648
    %v798 = vxor.u32 %v794, 2147483648
    %v799 = vmul.f32 %v796, 1.442695
    %v800 = vpow.pop %v799
    %v801 = vmul.f32 %v797, 1.442695
    %v802 = vpow.pop %v801
    %v803 = vmul.f32 %v798, 1.442695
    %v804 = vpow.pop %v803
    %v805 = vadd.f32 %v800, 1.0
    %v806 = vadd.f32 %v802, 1.0
    %v807 = vadd.f32 %v804, 1.0
    %v808 = vrcp.pop %v805
    %v809 = vmul.f32 %v805, %v808
    %v810 = vsub.f32 1.0, %v809
    %v811 = vmul.f32 %v808, %v810
    %v812 = vadd.f32 %v808, %v811
    %vm813 = vweird.f32 %v805
    %vm814 = vweird.f32 %v808
    %vm815 = vmor %vm813, %vm814
    %v816 = vsel %vm815, %v808, %v812
    %v817 = vand.u32 2147483647, %v805
    %vm818 = vcmp.eq.f32.partialorder %v817, 8.507059e+37
    %v819 = vand.u32 %v805, 2147483648
    %v820 = vor.u32 1.1754944e-38, %v819
    %v821 = vsel %vm818, %v820, %v816
    %v822 = vmul.f32 1.0, %v821
    %v823 = vrcp.pop %v806
    %v824 = vmul.f32 %v806, %v823
    %v825 = vsub.f32 1.0, %v824
    %v826 = vmul.f32 %v823, %v825
    %v827 = vadd.f32 %v823, %v826
    %vm828 = vweird.f32 %v806
    %vm829 = vweird.f32 %v823
    %vm830 = vmor %vm828, %vm829
    %v831 = vsel %vm830, %v823, %v827
    %v832 = vand.u32 2147483647, %v806
    %vm833 = vcmp.eq.f32.partialorder %v832, 8.507059e+37
    %v834 = vand.u32 %v806, 2147483648
    %v835 = vor.u32 1.1754944e-38, %v834
    %v836 = vsel %vm833, %v835, %v831
    %v837 = vmul.f32 1.0, %v836
    %v838 = vrcp.pop %v807
    %v839 = vmul.f32 %v807, %v838
    %v840 = vsub.f32 1.0, %v839
    %v841 = vmul.f32 %v838, %v840
    %v842 = vadd.f32 %v838, %v841
    %vm843 = vweird.f32 %v807
    %vm844 = vweird.f32 %v838
    %vm845 = vmor %vm843, %vm844
    %v846 = vsel %vm845, %v838, %v842
    %v847 = vand.u32 2147483647, %v807
    %vm848 = vcmp.eq.f32.partialorder %v847, 8.507059e+37
    %v849 = vand.u32 %v807, 2147483648
    %v850 = vor.u32 1.1754944e-38, %v849
    %v851 = vsel %vm848, %v850, %v846
    %v852 = vmul.f32 1.0, %v851
    %v853 = vtanh.pop %v795
    %v854 = vmul.f32 %v837, 0.0
    %v855 = vmul.f32 %v822, %v853
    %v856 = vadd.f32 %v854, %v855
    %v857 = vtanh.pop %v856
    %v858 = vmul.f32 %v852, %v857
    %s859 = smul.u32 1, 4
    %s860 = smul.addr %s859, 8
    %s861 = scalar_lea.vmem [#allocation2], %s860
    %v862 = vld [vmem:[%s861] sm:$0xff]
    %v863 = vld [vmem:[%s861 + $0x8] sm:$0xff]
    %v864 = vld [vmem:[%s861 + $0x10] sm:$0xff]
    %v865 = vld [vmem:[%s861 + $0x18] sm:$0xff]
    %v866 = vpack.c.bf16 %v858, %v858
    %867 = vmatpush.bf16.msra.mxu0 %v690
    %868 = vmatpush.bf16.msra.mxu0 %v686
    %869 = vmatpush.bf16.msra.mxu0 %v682
    %870 = vmatpush.bf16.msra.mxu0 %v678
    %871 = vmatpush.bf16.msra.mxu0 %v674
    %872 = vmatpush.bf16.msra.mxu0 %v670
    %873 = vmatpush.bf16.msra.mxu0 %v666
    %874 = vmatpush.bf16.msra.mxu0 %v662
    %875 = vmatmul.bf16.gmra.mxu0 %v866
    %v876 = vpop.f32.mrf.mxu0
    %v877 = vadd.f32 0.0, %v876
    %v878 = vpop.f32.mrf.mxu0
    %879 = vdwg.mxu0
    %880 = vmatpush.bf16.msra.mxu0 %v691
    %881 = vmatpush.bf16.msra.mxu0 %v687
    %882 = vmatpush.bf16.msra.mxu0 %v683
    %883 = vmatpush.bf16.msra.mxu0 %v679
    %884 = vmatpush.bf16.msra.mxu0 %v675
    %885 = vmatpush.bf16.msra.mxu0 %v671
    %886 = vmatpush.bf16.msra.mxu0 %v667
    %887 = vmatpush.bf16.msra.mxu0 %v663
    %888 = vmatmul.bf16.gmra.mxu0 %v866
    %v889 = vpop.f32.mrf.mxu0
    %v890 = vadd.f32 0.0, %v889
    %v891 = vpop.f32.mrf.mxu0
    %892 = vdwg.mxu0
    %893 = vmatpush.bf16.msra.mxu0 %v692
    %894 = vmatpush.bf16.msra.mxu0 %v688
    %895 = vmatpush.bf16.msra.mxu0 %v684
    %896 = vmatpush.bf16.msra.mxu0 %v680
    %897 = vmatpush.bf16.msra.mxu0 %v676
    %898 = vmatpush.bf16.msra.mxu0 %v672
    %899 = vmatpush.bf16.msra.mxu0 %v668
    %900 = vmatpush.bf16.msra.mxu0 %v664
    %901 = vmatmul.bf16.gmra.mxu0 %v866
    %v902 = vpop.f32.mrf.mxu0
    %v903 = vadd.f32 0.0, %v902
    %v904 = vpop.f32.mrf.mxu0
    %905 = vdwg.mxu0
    %906 = vmatpush.bf16.msra.mxu0 %v693
    %907 = vmatpush.bf16.msra.mxu0 %v689
    %908 = vmatpush.bf16.msra.mxu0 %v685
    %909 = vmatpush.bf16.msra.mxu0 %v681
    %910 = vmatpush.bf16.msra.mxu0 %v677
    %911 = vmatpush.bf16.msra.mxu0 %v673
    %912 = vmatpush.bf16.msra.mxu0 %v669
    %913 = vmatpush.bf16.msra.mxu0 %v665
    %914 = vmatmul.bf16.gmra.mxu0 %v866
    %v915 = vpop.f32.mrf.mxu0
    %v916 = vadd.f32 0.0, %v915
    %v917 = vpop.f32.mrf.mxu0
    %918 = vdwg.mxu0
    %v919 = vadd.f32 %v862, %v877
    %v920 = vadd.f32 %v863, %v890
    %v921 = vadd.f32 %v864, %v903
    %v922 = vadd.f32 %v865, %v916
    %v923 = vadd.f32 %v919, %v784
    %v924 = vadd.f32 %v920, %v785
    %v925 = vadd.f32 %v921, %v786
    %v926 = vadd.f32 %v922, %v787
    %v927 = vxor.u32 %v923, 2147483648
    %v928 = vxor.u32 %v924, 2147483648
    %v929 = vxor.u32 %v925, 2147483648
    %v930 = vmul.f32 %v927, 1.442695
    %v931 = vpow.pop %v930
    %v932 = vmul.f32 %v928, 1.442695
    %v933 = vpow.pop %v932
    %v934 = vmul.f32 %v929, 1.442695
    %v935 = vpow.pop %v934
    %v936 = vadd.f32 %v931, 1.0
    %v937 = vadd.f32 %v933, 1.0
    %v938 = vadd.f32 %v935, 1.0
    %v939 = vrcp.pop %v936
    %v940 = vmul.f32 %v936, %v939
    %v941 = vsub.f32 1.0, %v940
    %v942 = vmul.f32 %v939, %v941
    %v943 = vadd.f32 %v939, %v942
    %vm944 = vweird.f32 %v936
    %vm945 = vweird.f32 %v939
    %vm946 = vmor %vm944, %vm945
    %v947 = vsel %vm946, %v939, %v943
    %v948 = vand.u32 2147483647, %v936
    %vm949 = vcmp.eq.f32.partialorder %v948, 8.507059e+37
    %v950 = vand.u32 %v936, 2147483648
    %v951 = vor.u32 1.1754944e-38, %v950
    %v952 = vsel %vm949, %v951, %v947
    %v953 = vmul.f32 1.0, %v952
    %v954 = vrcp.pop %v937
    %v955 = vmul.f32 %v937, %v954
    %v956 = vsub.f32 1.0, %v955
    %v957 = vmul.f32 %v954, %v956
    %v958 = vadd.f32 %v954, %v957
    %vm959 = vweird.f32 %v937
    %vm960 = vweird.f32 %v954
    %vm961 = vmor %vm959, %vm960
    %v962 = vsel %vm961, %v954, %v958
    %v963 = vand.u32 2147483647, %v937
    %vm964 = vcmp.eq.f32.partialorder %v963, 8.507059e+37
    %v965 = vand.u32 %v937, 2147483648
    %v966 = vor.u32 1.1754944e-38, %v965
    %v967 = vsel %vm964, %v966, %v962
    %v968 = vmul.f32 1.0, %v967
    %v969 = vrcp.pop %v938
    %v970 = vmul.f32 %v938, %v969
    %v971 = vsub.f32 1.0, %v970
    %v972 = vmul.f32 %v969, %v971
    %v973 = vadd.f32 %v969, %v972
    %vm974 = vweird.f32 %v938
    %vm975 = vweird.f32 %v969
    %vm976 = vmor %vm974, %vm975
    %v977 = vsel %vm976, %v969, %v973
    %v978 = vand.u32 2147483647, %v938
    %vm979 = vcmp.eq.f32.partialorder %v978, 8.507059e+37
    %v980 = vand.u32 %v938, 2147483648
    %v981 = vor.u32 1.1754944e-38, %v980
    %v982 = vsel %vm979, %v981, %v977
    %v983 = vmul.f32 1.0, %v982
    %v984 = vtanh.pop %v926
    %v985 = vmul.f32 %v968, %v856
    %v986 = vmul.f32 %v953, %v984
    %v987 = vadd.f32 %v985, %v986
    %v988 = vtanh.pop %v987
    %v989 = vmul.f32 %v983, %v988
    %s990 = smul.u32 2, 4
    %s991 = smul.addr %s990, 8
    %s992 = scalar_lea.vmem [#allocation2], %s991
    %v993 = vld [vmem:[%s992] sm:$0xff]
    %v994 = vld [vmem:[%s992 + $0x8] sm:$0xff]
    %v995 = vld [vmem:[%s992 + $0x10] sm:$0xff]
    %v996 = vld [vmem:[%s992 + $0x18] sm:$0xff]
    %v997 = vpack.c.bf16 %v989, %v989
    %998 = vmatpush.bf16.msra.mxu0 %v690
    %999 = vmatpush.bf16.msra.mxu0 %v686
    %1000 = vmatpush.bf16.msra.mxu0 %v682
    %1001 = vmatpush.bf16.msra.mxu0 %v678
    %1002 = vmatpush.bf16.msra.mxu0 %v674
    %1003 = vmatpush.bf16.msra.mxu0 %v670
    %1004 = vmatpush.bf16.msra.mxu0 %v666
    %1005 = vmatpush.bf16.msra.mxu0 %v662
    %1006 = vmatmul.bf16.gmra.mxu0 %v997
    %v1007 = vpop.f32.mrf.mxu0
    %v1008 = vadd.f32 0.0, %v1007
    %v1009 = vpop.f32.mrf.mxu0
    %1010 = vdwg.mxu0
    %1011 = vmatpush.bf16.msra.mxu0 %v691
    %1012 = vmatpush.bf16.msra.mxu0 %v687
    %1013 = vmatpush.bf16.msra.mxu0 %v683
    %1014 = vmatpush.bf16.msra.mxu0 %v679
    %1015 = vmatpush.bf16.msra.mxu0 %v675
    %1016 = vmatpush.bf16.msra.mxu0 %v671
    %1017 = vmatpush.bf16.msra.mxu0 %v667
    %1018 = vmatpush.bf16.msra.mxu0 %v663
    %1019 = vmatmul.bf16.gmra.mxu0 %v997
    %v1020 = vpop.f32.mrf.mxu0
    %v1021 = vadd.f32 0.0, %v1020
    %v1022 = vpop.f32.mrf.mxu0
    %1023 = vdwg.mxu0
    %1024 = vmatpush.bf16.msra.mxu0 %v692
    %1025 = vmatpush.bf16.msra.mxu0 %v688
    %1026 = vmatpush.bf16.msra.mxu0 %v684
    %1027 = vmatpush.bf16.msra.mxu0 %v680
    %1028 = vmatpush.bf16.msra.mxu0 %v676
    %1029 = vmatpush.bf16.msra.mxu0 %v672
    %1030 = vmatpush.bf16.msra.mxu0 %v668
    %1031 = vmatpush.bf16.msra.mxu0 %v664
    %1032 = vmatmul.bf16.gmra.mxu0 %v997
    %v1033 = vpop.f32.mrf.mxu0
    %v1034 = vadd.f32 0.0, %v1033
    %v1035 = vpop.f32.mrf.mxu0
    %1036 = vdwg.mxu0
    %1037 = vmatpush.bf16.msra.mxu0 %v693
    %1038 = vmatpush.bf16.msra.mxu0 %v689
    %1039 = vmatpush.bf16.msra.mxu0 %v685
    %1040 = vmatpush.bf16.msra.mxu0 %v681
    %1041 = vmatpush.bf16.msra.mxu0 %v677
    %1042 = vmatpush.bf16.msra.mxu0 %v673
    %1043 = vmatpush.bf16.msra.mxu0 %v669
    %1044 = vmatpush.bf16.msra.mxu0 %v665
    %1045 = vmatmul.bf16.gmra.mxu0 %v997
    %v1046 = vpop.f32.mrf.mxu0
    %v1047 = vadd.f32 0.0, %v1046
    %v1048 = vpop.f32.mrf.mxu0
    %1049 = vdwg.mxu0
    %v1050 = vadd.f32 %v993, %v1008
    %v1051 = vadd.f32 %v994, %v1021
    %v1052 = vadd.f32 %v995, %v1034
    %v1053 = vadd.f32 %v996, %v1047
    %v1054 = vadd.f32 %v1050, %v784
    %v1055 = vadd.f32 %v1051, %v785
    %v1056 = vadd.f32 %v1052, %v786
    %v1057 = vadd.f32 %v1053, %v787
    %v1058 = vxor.u32 %v1054, 2147483648
    %v1059 = vxor.u32 %v1055, 2147483648
    %v1060 = vxor.u32 %v1056, 2147483648
    %v1061 = vmul.f32 %v1058, 1.442695
    %v1062 = vpow.pop %v1061
    %v1063 = vmul.f32 %v1059, 1.442695
    %v1064 = vpow.pop %v1063
    %v1065 = vmul.f32 %v1060, 1.442695
    %v1066 = vpow.pop %v1065
    %v1067 = vadd.f32 %v1062, 1.0
    %v1068 = vadd.f32 %v1064, 1.0
    %v1069 = vadd.f32 %v1066, 1.0
    %v1070 = vrcp.pop %v1067
    %v1071 = vmul.f32 %v1067, %v1070
    %v1072 = vsub.f32 1.0, %v1071
    %v1073 = vmul.f32 %v1070, %v1072
    %v1074 = vadd.f32 %v1070, %v1073
    %vm1075 = vweird.f32 %v1067
    %vm1076 = vweird.f32 %v1070
    %vm1077 = vmor %vm1075, %vm1076
    %v1078 = vsel %vm1077, %v1070, %v1074
    %v1079 = vand.u32 2147483647, %v1067
    %vm1080 = vcmp.eq.f32.partialorder %v1079, 8.507059e+37
    %v1081 = vand.u32 %v1067, 2147483648
    %v1082 = vor.u32 1.1754944e-38, %v1081
    %v1083 = vsel %vm1080, %v1082, %v1078
    %v1084 = vmul.f32 1.0, %v1083
    %v1085 = vrcp.pop %v1068
    %v1086 = vmul.f32 %v1068, %v1085
    %v1087 = vsub.f32 1.0, %v1086
    %v1088 = vmul.f32 %v1085, %v1087
    %v1089 = vadd.f32 %v1085, %v1088
    %vm1090 = vweird.f32 %v1068
    %vm1091 = vweird.f32 %v1085
    %vm1092 = vmor %vm1090, %vm1091
    %v1093 = vsel %vm1092, %v1085, %v1089
    %v1094 = vand.u32 2147483647, %v1068
    %vm1095 = vcmp.eq.f32.partialorder %v1094, 8.507059e+37
    %v1096 = vand.u32 %v1068, 2147483648
    %v1097 = vor.u32 1.1754944e-38, %v1096
    %v1098 = vsel %vm1095, %v1097, %v1093
    %v1099 = vmul.f32 1.0, %v1098
    %v1100 = vrcp.pop %v1069
    %v1101 = vmul.f32 %v1069, %v1100
    %v1102 = vsub.f32 1.0, %v1101
    %v1103 = vmul.f32 %v1100, %v1102
    %v1104 = vadd.f32 %v1100, %v1103
    %vm1105 = vweird.f32 %v1069
    %vm1106 = vweird.f32 %v1100
    %vm1107 = vmor %vm1105, %vm1106
    %v1108 = vsel %vm1107, %v1100, %v1104
    %v1109 = vand.u32 2147483647, %v1069
    %vm1110 = vcmp.eq.f32.partialorder %v1109, 8.507059e+37
    %v1111 = vand.u32 %v1069, 2147483648
    %v1112 = vor.u32 1.1754944e-38, %v1111
    %v1113 = vsel %vm1110, %v1112, %v1108
    %v1114 = vmul.f32 1.0, %v1113
    %v1115 = vtanh.pop %v1057
    %v1116 = vmul.f32 %v1099, %v987
    %v1117 = vmul.f32 %v1084, %v1115
    %v1118 = vadd.f32 %v1116, %v1117
    %v1119 = vtanh.pop %v1118
    %v1120 = vmul.f32 %v1114, %v1119
    %s1121 = smul.u32 3, 4
    %s1122 = smul.addr %s1121, 8
    %s1123 = scalar_lea.vmem [#allocation2], %s1122
    %v1124 = vld [vmem:[%s1123] sm:$0xff]
    %v1125 = vld [vmem:[%s1123 + $0x8] sm:$0xff]
    %v1126 = vld [vmem:[%s1123 + $0x10] sm:$0xff]
    %v1127 = vld [vmem:[%s1123 + $0x18] sm:$0xff]
    %v1128 = vpack.c.bf16 %v1120, %v1120
    %1129 = vmatpush.bf16.msra.mxu0 %v690
    %1130 = vmatpush.bf16.msra.mxu0 %v686
    %1131 = vmatpush.bf16.msra.mxu0 %v682
    %1132 = vmatpush.bf16.msra.mxu0 %v678
    %1133 = vmatpush.bf16.msra.mxu0 %v674
    %1134 = vmatpush.bf16.msra.mxu0 %v670
    %1135 = vmatpush.bf16.msra.mxu0 %v666
    %1136 = vmatpush.bf16.msra.mxu0 %v662
    %1137 = vmatmul.bf16.gmra.mxu0 %v1128
    %v1138 = vpop.f32.mrf.mxu0
    %v1139 = vadd.f32 0.0, %v1138
    %v1140 = vpop.f32.mrf.mxu0
    %1141 = vdwg.mxu0
    %1142 = vmatpush.bf16.msra.mxu0 %v691
    %1143 = vmatpush.bf16.msra.mxu0 %v687
    %1144 = vmatpush.bf16.msra.mxu0 %v683
    %1145 = vmatpush.bf16.msra.mxu0 %v679
    %1146 = vmatpush.bf16.msra.mxu0 %v675
    %1147 = vmatpush.bf16.msra.mxu0 %v671
    %1148 = vmatpush.bf16.msra.mxu0 %v667
    %1149 = vmatpush.bf16.msra.mxu0 %v663
    %1150 = vmatmul.bf16.gmra.mxu0 %v1128
    %v1151 = vpop.f32.mrf.mxu0
    %v1152 = vadd.f32 0.0, %v1151
    %v1153 = vpop.f32.mrf.mxu0
    %1154 = vdwg.mxu0
    %1155 = vmatpush.bf16.msra.mxu0 %v692
    %1156 = vmatpush.bf16.msra.mxu0 %v688
    %1157 = vmatpush.bf16.msra.mxu0 %v684
    %1158 = vmatpush.bf16.msra.mxu0 %v680
    %1159 = vmatpush.bf16.msra.mxu0 %v676
    %1160 = vmatpush.bf16.msra.mxu0 %v672
    %1161 = vmatpush.bf16.msra.mxu0 %v668
    %1162 = vmatpush.bf16.msra.mxu0 %v664
    %1163 = vmatmul.bf16.gmra.mxu0 %v1128
    %v1164 = vpop.f32.mrf.mxu0
    %v1165 = vadd.f32 0.0, %v1164
    %v1166 = vpop.f32.mrf.mxu0
    %1167 = vdwg.mxu0
    %1168 = vmatpush.bf16.msra.mxu0 %v693
    %1169 = vmatpush.bf16.msra.mxu0 %v689
    %1170 = vmatpush.bf16.msra.mxu0 %v685
    %1171 = vmatpush.bf16.msra.mxu0 %v681
    %1172 = vmatpush.bf16.msra.mxu0 %v677
    %1173 = vmatpush.bf16.msra.mxu0 %v673
    %1174 = vmatpush.bf16.msra.mxu0 %v669
    %1175 = vmatpush.bf16.msra.mxu0 %v665
    %1176 = vmatmul.bf16.gmra.mxu0 %v1128
    %v1177 = vpop.f32.mrf.mxu0
    %v1178 = vadd.f32 0.0, %v1177
    %v1179 = vpop.f32.mrf.mxu0
    %1180 = vdwg.mxu0
    %v1181 = vadd.f32 %v1124, %v1139
    %v1182 = vadd.f32 %v1125, %v1152
    %v1183 = vadd.f32 %v1126, %v1165
    %v1184 = vadd.f32 %v1127, %v1178
    %v1185 = vadd.f32 %v1181, %v784
    %v1186 = vadd.f32 %v1182, %v785
    %v1187 = vadd.f32 %v1183, %v786
    %v1188 = vadd.f32 %v1184, %v787
    %v1189 = vxor.u32 %v1185, 2147483648
    %v1190 = vxor.u32 %v1186, 2147483648
    %v1191 = vxor.u32 %v1187, 2147483648
    %v1192 = vmul.f32 %v1189, 1.442695
    %v1193 = vpow.pop %v1192
    %v1194 = vmul.f32 %v1190, 1.442695
    %v1195 = vpow.pop %v1194
    %v1196 = vmul.f32 %v1191, 1.442695
    %v1197 = vpow.pop %v1196
    %v1198 = vadd.f32 %v1193, 1.0
    %v1199 = vadd.f32 %v1195, 1.0
    %v1200 = vadd.f32 %v1197, 1.0
    %v1201 = vrcp.pop %v1198
    %v1202 = vmul.f32 %v1198, %v1201
    %v1203 = vsub.f32 1.0, %v1202
    %v1204 = vmul.f32 %v1201, %v1203
    %v1205 = vadd.f32 %v1201, %v1204
    %vm1206 = vweird.f32 %v1198
    %vm1207 = vweird.f32 %v1201
    %vm1208 = vmor %vm1206, %vm1207
    %v1209 = vsel %vm1208, %v1201, %v1205
    %v1210 = vand.u32 2147483647, %v1198
    %vm1211 = vcmp.eq.f32.partialorder %v1210, 8.507059e+37
    %v1212 = vand.u32 %v1198, 2147483648
    %v1213 = vor.u32 1.1754944e-38, %v1212
    %v1214 = vsel %vm1211, %v1213, %v1209
    %v1215 = vmul.f32 1.0, %v1214
    %v1216 = vrcp.pop %v1199
    %v1217 = vmul.f32 %v1199, %v1216
    %v1218 = vsub.f32 1.0, %v1217
    %v1219 = vmul.f32 %v1216, %v1218
    %v1220 = vadd.f32 %v1216, %v1219
    %vm1221 = vweird.f32 %v1199
    %vm1222 = vweird.f32 %v1216
    %vm1223 = vmor %vm1221, %vm1222
    %v1224 = vsel %vm1223, %v1216, %v1220
    %v1225 = vand.u32 2147483647, %v1199
    %vm1226 = vcmp.eq.f32.partialorder %v1225, 8.507059e+37
    %v1227 = vand.u32 %v1199, 2147483648
    %v1228 = vor.u32 1.1754944e-38, %v1227
    %v1229 = vsel %vm1226, %v1228, %v1224
    %v1230 = vmul.f32 1.0, %v1229
    %v1231 = vrcp.pop %v1200
    %v1232 = vmul.f32 %v1200, %v1231
    %v1233 = vsub.f32 1.0, %v1232
    %v1234 = vmul.f32 %v1231, %v1233
    %v1235 = vadd.f32 %v1231, %v1234
    %vm1236 = vweird.f32 %v1200
    %vm1237 = vweird.f32 %v1231
    %vm1238 = vmor %vm1236, %vm1237
    %v1239 = vsel %vm1238, %v1231, %v1235
    %v1240 = vand.u32 2147483647, %v1200
    %vm1241 = vcmp.eq.f32.partialorder %v1240, 8.507059e+37
    %v1242 = vand.u32 %v1200, 2147483648
    %v1243 = vor.u32 1.1754944e-38, %v1242
    %v1244 = vsel %vm1241, %v1243, %v1239
    %v1245 = vmul.f32 1.0, %v1244
    %v1246 = vtanh.pop %v1188
    %v1247 = vmul.f32 %v1230, %v1118
    %v1248 = vmul.f32 %v1215, %v1246
    %v1249 = vadd.f32 %v1247, %v1248
    %v1250 = vtanh.pop %v1249
    %v1251 = vmul.f32 %v1245, %v1250
    %s1252 = smul.u32 4, 4
    %s1253 = smul.addr %s1252, 8
    %s1254 = scalar_lea.vmem [#allocation2], %s1253
    %v1255 = vld [vmem:[%s1254] sm:$0xff]
    %v1256 = vld [vmem:[%s1254 + $0x8] sm:$0xff]
    %v1257 = vld [vmem:[%s1254 + $0x10] sm:$0xff]
    %v1258 = vld [vmem:[%s1254 + $0x18] sm:$0xff]
    %v1259 = vpack.c.bf16 %v1251, %v1251
    %1260 = vmatpush.bf16.msra.mxu0 %v690
    %1261 = vmatpush.bf16.msra.mxu0 %v686
    %1262 = vmatpush.bf16.msra.mxu0 %v682
    %1263 = vmatpush.bf16.msra.mxu0 %v678
    %1264 = vmatpush.bf16.msra.mxu0 %v674
    %1265 = vmatpush.bf16.msra.mxu0 %v670
    %1266 = vmatpush.bf16.msra.mxu0 %v666
    %1267 = vmatpush.bf16.msra.mxu0 %v662
    %1268 = vmatmul.bf16.gmra.mxu0 %v1259
    %v1269 = vpop.f32.mrf.mxu0
    %v1270 = vadd.f32 0.0, %v1269
    %v1271 = vpop.f32.mrf.mxu0
    %1272 = vdwg.mxu0
    %1273 = vmatpush.bf16.msra.mxu0 %v691
    %1274 = vmatpush.bf16.msra.mxu0 %v687
    %1275 = vmatpush.bf16.msra.mxu0 %v683
    %1276 = vmatpush.bf16.msra.mxu0 %v679
    %1277 = vmatpush.bf16.msra.mxu0 %v675
    %1278 = vmatpush.bf16.msra.mxu0 %v671
    %1279 = vmatpush.bf16.msra.mxu0 %v667
    %1280 = vmatpush.bf16.msra.mxu0 %v663
    %1281 = vmatmul.bf16.gmra.mxu0 %v1259
    %v1282 = vpop.f32.mrf.mxu0
    %v1283 = vadd.f32 0.0, %v1282
    %v1284 = vpop.f32.mrf.mxu0
    %1285 = vdwg.mxu0
    %1286 = vmatpush.bf16.msra.mxu0 %v692
    %1287 = vmatpush.bf16.msra.mxu0 %v688
    %1288 = vmatpush.bf16.msra.mxu0 %v684
    %1289 = vmatpush.bf16.msra.mxu0 %v680
    %1290 = vmatpush.bf16.msra.mxu0 %v676
    %1291 = vmatpush.bf16.msra.mxu0 %v672
    %1292 = vmatpush.bf16.msra.mxu0 %v668
    %1293 = vmatpush.bf16.msra.mxu0 %v664
    %1294 = vmatmul.bf16.gmra.mxu0 %v1259
    %v1295 = vpop.f32.mrf.mxu0
    %v1296 = vadd.f32 0.0, %v1295
    %v1297 = vpop.f32.mrf.mxu0
    %1298 = vdwg.mxu0
    %1299 = vmatpush.bf16.msra.mxu0 %v693
    %1300 = vmatpush.bf16.msra.mxu0 %v689
    %1301 = vmatpush.bf16.msra.mxu0 %v685
    %1302 = vmatpush.bf16.msra.mxu0 %v681
    %1303 = vmatpush.bf16.msra.mxu0 %v677
    %1304 = vmatpush.bf16.msra.mxu0 %v673
    %1305 = vmatpush.bf16.msra.mxu0 %v669
    %1306 = vmatpush.bf16.msra.mxu0 %v665
    %1307 = vmatmul.bf16.gmra.mxu0 %v1259
    %v1308 = vpop.f32.mrf.mxu0
    %v1309 = vadd.f32 0.0, %v1308
    %v1310 = vpop.f32.mrf.mxu0
    %1311 = vdwg.mxu0
    %v1312 = vadd.f32 %v1255, %v1270
    %v1313 = vadd.f32 %v1256, %v1283
    %v1314 = vadd.f32 %v1257, %v1296
    %v1315 = vadd.f32 %v1258, %v1309
    %v1316 = vadd.f32 %v1312, %v784
    %v1317 = vadd.f32 %v1313, %v785
    %v1318 = vadd.f32 %v1314, %v786
    %v1319 = vadd.f32 %v1315, %v787
    %v1320 = vxor.u32 %v1316, 2147483648
    %v1321 = vxor.u32 %v1317, 2147483648
    %v1322 = vxor.u32 %v1318, 2147483648
    %v1323 = vmul.f32 %v1320, 1.442695
    %v1324 = vpow.pop %v1323
    %v1325 = vmul.f32 %v1321, 1.442695
    %v1326 = vpow.pop %v1325
    %v1327 = vmul.f32 %v1322, 1.442695
    %v1328 = vpow.pop %v1327
    %v1329 = vadd.f32 %v1324, 1.0
    %v1330 = vadd.f32 %v1326, 1.0
    %v1331 = vadd.f32 %v1328, 1.0
    %v1332 = vrcp.pop %v1329
    %v1333 = vmul.f32 %v1329, %v1332
    %v1334 = vsub.f32 1.0, %v1333
    %v1335 = vmul.f32 %v1332, %v1334
    %v1336 = vadd.f32 %v1332, %v1335
    %vm1337 = vweird.f32 %v1329
    %vm1338 = vweird.f32 %v1332
    %vm1339 = vmor %vm1337, %vm1338
    %v1340 = vsel %vm1339, %v1332, %v1336
    %v1341 = vand.u32 2147483647, %v1329
    %vm1342 = vcmp.eq.f32.partialorder %v1341, 8.507059e+37
    %v1343 = vand.u32 %v1329, 2147483648
    %v1344 = vor.u32 1.1754944e-38, %v1343
    %v1345 = vsel %vm1342, %v1344, %v1340
    %v1346 = vmul.f32 1.0, %v1345
    %v1347 = vrcp.pop %v1330
    %v1348 = vmul.f32 %v1330, %v1347
    %v1349 = vsub.f32 1.0, %v1348
    %v1350 = vmul.f32 %v1347, %v1349
    %v1351 = vadd.f32 %v1347, %v1350
    %vm1352 = vweird.f32 %v1330
    %vm1353 = vweird.f32 %v1347
    %vm1354 = vmor %vm1352, %vm1353
    %v1355 = vsel %vm1354, %v1347, %v1351
    %v1356 = vand.u32 2147483647, %v1330
    %vm1357 = vcmp.eq.f32.partialorder %v1356, 8.507059e+37
    %v1358 = vand.u32 %v1330, 2147483648
    %v1359 = vor.u32 1.1754944e-38, %v1358
    %v1360 = vsel %vm1357, %v1359, %v1355
    %v1361 = vmul.f32 1.0, %v1360
    %v1362 = vrcp.pop %v1331
    %v1363 = vmul.f32 %v1331, %v1362
    %v1364 = vsub.f32 1.0, %v1363
    %v1365 = vmul.f32 %v1362, %v1364
    %v1366 = vadd.f32 %v1362, %v1365
    %vm1367 = vweird.f32 %v1331
    %vm1368 = vweird.f32 %v1362
    %vm1369 = vmor %vm1367, %vm1368
    %v1370 = vsel %vm1369, %v1362, %v1366
    %v1371 = vand.u32 2147483647, %v1331
    %vm1372 = vcmp.eq.f32.partialorder %v1371, 8.507059e+37
    %v1373 = vand.u32 %v1331, 2147483648
    %v1374 = vor.u32 1.1754944e-38, %v1373
    %v1375 = vsel %vm1372, %v1374, %v1370
    %v1376 = vmul.f32 1.0, %v1375
    %v1377 = vtanh.pop %v1319
    %v1378 = vmul.f32 %v1361, %v1249
    %v1379 = vmul.f32 %v1346, %v1377
    %v1380 = vadd.f32 %v1378, %v1379
    %v1381 = vtanh.pop %v1380
    %v1382 = vmul.f32 %v1376, %v1381
    %s1383 = smul.u32 5, 4
    %s1384 = smul.addr %s1383, 8
    %s1385 = scalar_lea.vmem [#allocation2], %s1384
    %v1386 = vld [vmem:[%s1385] sm:$0xff]
    %v1387 = vld [vmem:[%s1385 + $0x8] sm:$0xff]
    %v1388 = vld [vmem:[%s1385 + $0x10] sm:$0xff]
    %v1389 = vld [vmem:[%s1385 + $0x18] sm:$0xff]
    %v1390 = vpack.c.bf16 %v1382, %v1382
    %1391 = vmatpush.bf16.msra.mxu0 %v690
    %1392 = vmatpush.bf16.msra.mxu0 %v686
    %1393 = vmatpush.bf16.msra.mxu0 %v682
    %1394 = vmatpush.bf16.msra.mxu0 %v678
    %1395 = vmatpush.bf16.msra.mxu0 %v674
    %1396 = vmatpush.bf16.msra.mxu0 %v670
    %1397 = vmatpush.bf16.msra.mxu0 %v666
    %1398 = vmatpush.bf16.msra.mxu0 %v662
    %1399 = vmatmul.bf16.gmra.mxu0 %v1390
    %v1400 = vpop.f32.mrf.mxu0
    %v1401 = vadd.f32 0.0, %v1400
    %v1402 = vpop.f32.mrf.mxu0
    %1403 = vdwg.mxu0
    %1404 = vmatpush.bf16.msra.mxu0 %v691
    %1405 = vmatpush.bf16.msra.mxu0 %v687
    %1406 = vmatpush.bf16.msra.mxu0 %v683
    %1407 = vmatpush.bf16.msra.mxu0 %v679
    %1408 = vmatpush.bf16.msra.mxu0 %v675
    %1409 = vmatpush.bf16.msra.mxu0 %v671
    %1410 = vmatpush.bf16.msra.mxu0 %v667
    %1411 = vmatpush.bf16.msra.mxu0 %v663
    %1412 = vmatmul.bf16.gmra.mxu0 %v1390
    %v1413 = vpop.f32.mrf.mxu0
    %v1414 = vadd.f32 0.0, %v1413
    %v1415 = vpop.f32.mrf.mxu0
    %1416 = vdwg.mxu0
    %1417 = vmatpush.bf16.msra.mxu0 %v692
    %1418 = vmatpush.bf16.msra.mxu0 %v688
    %1419 = vmatpush.bf16.msra.mxu0 %v684
    %1420 = vmatpush.bf16.msra.mxu0 %v680
    %1421 = vmatpush.bf16.msra.mxu0 %v676
    %1422 = vmatpush.bf16.msra.mxu0 %v672
    %1423 = vmatpush.bf16.msra.mxu0 %v668
    %1424 = vmatpush.bf16.msra.mxu0 %v664
    %1425 = vmatmul.bf16.gmra.mxu0 %v1390
    %v1426 = vpop.f32.mrf.mxu0
    %v1427 = vadd.f32 0.0, %v1426
    %v1428 = vpop.f32.mrf.mxu0
    %1429 = vdwg.mxu0
    %1430 = vmatpush.bf16.msra.mxu0 %v693
    %1431 = vmatpush.bf16.msra.mxu0 %v689
    %1432 = vmatpush.bf16.msra.mxu0 %v685
    %1433 = vmatpush.bf16.msra.mxu0 %v681
    %1434 = vmatpush.bf16.msra.mxu0 %v677
    %1435 = vmatpush.bf16.msra.mxu0 %v673
    %1436 = vmatpush.bf16.msra.mxu0 %v669
    %1437 = vmatpush.bf16.msra.mxu0 %v665
    %1438 = vmatmul.bf16.gmra.mxu0 %v1390
    %v1439 = vpop.f32.mrf.mxu0
    %v1440 = vadd.f32 0.0, %v1439
    %v1441 = vpop.f32.mrf.mxu0
    %1442 = vdwg.mxu0
    %v1443 = vadd.f32 %v1386, %v1401
    %v1444 = vadd.f32 %v1387, %v1414
    %v1445 = vadd.f32 %v1388, %v1427
    %v1446 = vadd.f32 %v1389, %v1440
    %v1447 = vadd.f32 %v1443, %v784
    %v1448 = vadd.f32 %v1444, %v785
    %v1449 = vadd.f32 %v1445, %v786
    %v1450 = vadd.f32 %v1446, %v787
    %v1451 = vxor.u32 %v1447, 2147483648
    %v1452 = vxor.u32 %v1448, 2147483648
    %v1453 = vxor.u32 %v1449, 2147483648
    %v1454 = vmul.f32 %v1451, 1.442695
    %v1455 = vpow.pop %v1454
    %v1456 = vmul.f32 %v1452, 1.442695
    %v1457 = vpow.pop %v1456
    %v1458 = vmul.f32 %v1453, 1.442695
    %v1459 = vpow.pop %v1458
    %v1460 = vadd.f32 %v1455, 1.0
    %v1461 = vadd.f32 %v1457, 1.0
    %v1462 = vadd.f32 %v1459, 1.0
    %v1463 = vrcp.pop %v1460
    %v1464 = vmul.f32 %v1460, %v1463
    %v1465 = vsub.f32 1.0, %v1464
    %v1466 = vmul.f32 %v1463, %v1465
    %v1467 = vadd.f32 %v1463, %v1466
    %vm1468 = vweird.f32 %v1460
    %vm1469 = vweird.f32 %v1463
    %vm1470 = vmor %vm1468, %vm1469
    %v1471 = vsel %vm1470, %v1463, %v1467
    %v1472 = vand.u32 2147483647, %v1460
    %vm1473 = vcmp.eq.f32.partialorder %v1472, 8.507059e+37
    %v1474 = vand.u32 %v1460, 2147483648
    %v1475 = vor.u32 1.1754944e-38, %v1474
    %v1476 = vsel %vm1473, %v1475, %v1471
    %v1477 = vmul.f32 1.0, %v1476
    %v1478 = vrcp.pop %v1461
    %v1479 = vmul.f32 %v1461, %v1478
    %v1480 = vsub.f32 1.0, %v1479
    %v1481 = vmul.f32 %v1478, %v1480
    %v1482 = vadd.f32 %v1478, %v1481
    %vm1483 = vweird.f32 %v1461
    %vm1484 = vweird.f32 %v1478
    %vm1485 = vmor %vm1483, %vm1484
    %v1486 = vsel %vm1485, %v1478, %v1482
    %v1487 = vand.u32 2147483647, %v1461
    %vm1488 = vcmp.eq.f32.partialorder %v1487, 8.507059e+37
    %v1489 = vand.u32 %v1461, 2147483648
    %v1490 = vor.u32 1.1754944e-38, %v1489
    %v1491 = vsel %vm1488, %v1490, %v1486
    %v1492 = vmul.f32 1.0, %v1491
    %v1493 = vrcp.pop %v1462
    %v1494 = vmul.f32 %v1462, %v1493
    %v1495 = vsub.f32 1.0, %v1494
    %v1496 = vmul.f32 %v1493, %v1495
    %v1497 = vadd.f32 %v1493, %v1496
    %vm1498 = vweird.f32 %v1462
    %vm1499 = vweird.f32 %v1493
    %vm1500 = vmor %vm1498, %vm1499
    %v1501 = vsel %vm1500, %v1493, %v1497
    %v1502 = vand.u32 2147483647, %v1462
    %vm1503 = vcmp.eq.f32.partialorder %v1502, 8.507059e+37
    %v1504 = vand.u32 %v1462, 2147483648
    %v1505 = vor.u32 1.1754944e-38, %v1504
    %v1506 = vsel %vm1503, %v1505, %v1501
    %v1507 = vmul.f32 1.0, %v1506
    %v1508 = vtanh.pop %v1450
    %v1509 = vmul.f32 %v1492, %v1380
    %v1510 = vmul.f32 %v1477, %v1508
    %v1511 = vadd.f32 %v1509, %v1510
    %v1512 = vtanh.pop %v1511
    %v1513 = vmul.f32 %v1507, %v1512
    %s1514 = smul.u32 6, 4
    %s1515 = smul.addr %s1514, 8
    %s1516 = scalar_lea.vmem [#allocation2], %s1515
    %v1517 = vld [vmem:[%s1516] sm:$0xff]
    %v1518 = vld [vmem:[%s1516 + $0x8] sm:$0xff]
    %v1519 = vld [vmem:[%s1516 + $0x10] sm:$0xff]
    %v1520 = vld [vmem:[%s1516 + $0x18] sm:$0xff]
    %v1521 = vpack.c.bf16 %v1513, %v1513
    %1522 = vmatpush.bf16.msra.mxu0 %v690
    %1523 = vmatpush.bf16.msra.mxu0 %v686
    %1524 = vmatpush.bf16.msra.mxu0 %v682
    %1525 = vmatpush.bf16.msra.mxu0 %v678
    %1526 = vmatpush.bf16.msra.mxu0 %v674
    %1527 = vmatpush.bf16.msra.mxu0 %v670
    %1528 = vmatpush.bf16.msra.mxu0 %v666
    %1529 = vmatpush.bf16.msra.mxu0 %v662
    %1530 = vmatmul.bf16.gmra.mxu0 %v1521
    %v1531 = vpop.f32.mrf.mxu0
    %v1532 = vadd.f32 0.0, %v1531
    %v1533 = vpop.f32.mrf.mxu0
    %1534 = vdwg.mxu0
    %1535 = vmatpush.bf16.msra.mxu0 %v691
    %1536 = vmatpush.bf16.msra.mxu0 %v687
    %1537 = vmatpush.bf16.msra.mxu0 %v683
    %1538 = vmatpush.bf16.msra.mxu0 %v679
    %1539 = vmatpush.bf16.msra.mxu0 %v675
    %1540 = vmatpush.bf16.msra.mxu0 %v671
    %1541 = vmatpush.bf16.msra.mxu0 %v667
    %1542 = vmatpush.bf16.msra.mxu0 %v663
    %1543 = vmatmul.bf16.gmra.mxu0 %v1521
    %v1544 = vpop.f32.mrf.mxu0
    %v1545 = vadd.f32 0.0, %v1544
    %v1546 = vpop.f32.mrf.mxu0
    %1547 = vdwg.mxu0
    %1548 = vmatpush.bf16.msra.mxu0 %v692
    %1549 = vmatpush.bf16.msra.mxu0 %v688
    %1550 = vmatpush.bf16.msra.mxu0 %v684
    %1551 = vmatpush.bf16.msra.mxu0 %v680
    %1552 = vmatpush.bf16.msra.mxu0 %v676
    %1553 = vmatpush.bf16.msra.mxu0 %v672
    %1554 = vmatpush.bf16.msra.mxu0 %v668
    %1555 = vmatpush.bf16.msra.mxu0 %v664
    %1556 = vmatmul.bf16.gmra.mxu0 %v1521
    %v1557 = vpop.f32.mrf.mxu0
    %v1558 = vadd.f32 0.0, %v1557
    %v1559 = vpop.f32.mrf.mxu0
    %1560 = vdwg.mxu0
    %1561 = vmatpush.bf16.msra.mxu0 %v693
    %1562 = vmatpush.bf16.msra.mxu0 %v689
    %1563 = vmatpush.bf16.msra.mxu0 %v685
    %1564 = vmatpush.bf16.msra.mxu0 %v681
    %1565 = vmatpush.bf16.msra.mxu0 %v677
    %1566 = vmatpush.bf16.msra.mxu0 %v673
    %1567 = vmatpush.bf16.msra.mxu0 %v669
    %1568 = vmatpush.bf16.msra.mxu0 %v665
    %1569 = vmatmul.bf16.gmra.mxu0 %v1521
    %v1570 = vpop.f32.mrf.mxu0
    %v1571 = vadd.f32 0.0, %v1570
    %v1572 = vpop.f32.mrf.mxu0
    %1573 = vdwg.mxu0
    %v1574 = vadd.f32 %v1517, %v1532
    %v1575 = vadd.f32 %v1518, %v1545
    %v1576 = vadd.f32 %v1519, %v1558
    %v1577 = vadd.f32 %v1520, %v1571
    %v1578 = vadd.f32 %v1574, %v784
    %v1579 = vadd.f32 %v1575, %v785
    %v1580 = vadd.f32 %v1576, %v786
    %v1581 = vadd.f32 %v1577, %v787
    %v1582 = vxor.u32 %v1578, 2147483648
    %v1583 = vxor.u32 %v1579, 2147483648
    %v1584 = vxor.u32 %v1580, 2147483648
    %v1585 = vmul.f32 %v1582, 1.442695
    %v1586 = vpow.pop %v1585
    %v1587 = vmul.f32 %v1583, 1.442695
    %v1588 = vpow.pop %v1587
    %v1589 = vmul.f32 %v1584, 1.442695
    %v1590 = vpow.pop %v1589
    %v1591 = vadd.f32 %v1586, 1.0
    %v1592 = vadd.f32 %v1588, 1.0
    %v1593 = vadd.f32 %v1590, 1.0
    %v1594 = vrcp.pop %v1591
    %v1595 = vmul.f32 %v1591, %v1594
    %v1596 = vsub.f32 1.0, %v1595
    %v1597 = vmul.f32 %v1594, %v1596
    %v1598 = vadd.f32 %v1594, %v1597
    %vm1599 = vweird.f32 %v1591
    %vm1600 = vweird.f32 %v1594
    %vm1601 = vmor %vm1599, %vm1600
    %v1602 = vsel %vm1601, %v1594, %v1598
    %v1603 = vand.u32 2147483647, %v1591
    %vm1604 = vcmp.eq.f32.partialorder %v1603, 8.507059e+37
    %v1605 = vand.u32 %v1591, 2147483648
    %v1606 = vor.u32 1.1754944e-38, %v1605
    %v1607 = vsel %vm1604, %v1606, %v1602
    %v1608 = vmul.f32 1.0, %v1607
    %v1609 = vrcp.pop %v1592
    %v1610 = vmul.f32 %v1592, %v1609
    %v1611 = vsub.f32 1.0, %v1610
    %v1612 = vmul.f32 %v1609, %v1611
    %v1613 = vadd.f32 %v1609, %v1612
    %vm1614 = vweird.f32 %v1592
    %vm1615 = vweird.f32 %v1609
    %vm1616 = vmor %vm1614, %vm1615
    %v1617 = vsel %vm1616, %v1609, %v1613
    %v1618 = vand.u32 2147483647, %v1592
    %vm1619 = vcmp.eq.f32.partialorder %v1618, 8.507059e+37
    %v1620 = vand.u32 %v1592, 2147483648
    %v1621 = vor.u32 1.1754944e-38, %v1620
    %v1622 = vsel %vm1619, %v1621, %v1617
    %v1623 = vmul.f32 1.0, %v1622
    %v1624 = vrcp.pop %v1593
    %v1625 = vmul.f32 %v1593, %v1624
    %v1626 = vsub.f32 1.0, %v1625
    %v1627 = vmul.f32 %v1624, %v1626
    %v1628 = vadd.f32 %v1624, %v1627
    %vm1629 = vweird.f32 %v1593
    %vm1630 = vweird.f32 %v1624
    %vm1631 = vmor %vm1629, %vm1630
    %v1632 = vsel %vm1631, %v1624, %v1628
    %v1633 = vand.u32 2147483647, %v1593
    %vm1634 = vcmp.eq.f32.partialorder %v1633, 8.507059e+37
    %v1635 = vand.u32 %v1593, 2147483648
    %v1636 = vor.u32 1.1754944e-38, %v1635
    %v1637 = vsel %vm1634, %v1636, %v1632
    %v1638 = vmul.f32 1.0, %v1637
    %v1639 = vtanh.pop %v1581
    %v1640 = vmul.f32 %v1623, %v1511
    %v1641 = vmul.f32 %v1608, %v1639
    %v1642 = vadd.f32 %v1640, %v1641
    %v1643 = vtanh.pop %v1642
    %v1644 = vmul.f32 %v1638, %v1643
    %s1645 = smul.u32 7, 4
    %s1646 = smul.addr %s1645, 8
    %s1647 = scalar_lea.vmem [#allocation2], %s1646
    %v1648 = vld [vmem:[%s1647] sm:$0xff]
    %v1649 = vld [vmem:[%s1647 + $0x8] sm:$0xff]
    %v1650 = vld [vmem:[%s1647 + $0x10] sm:$0xff]
    %v1651 = vld [vmem:[%s1647 + $0x18] sm:$0xff]
    %v1652 = vpack.c.bf16 %v1644, %v1644
    %1653 = vmatpush.bf16.msra.mxu0 %v690
    %1654 = vmatpush.bf16.msra.mxu0 %v686
    %1655 = vmatpush.bf16.msra.mxu0 %v682
    %1656 = vmatpush.bf16.msra.mxu0 %v678
    %1657 = vmatpush.bf16.msra.mxu0 %v674
    %1658 = vmatpush.bf16.msra.mxu0 %v670
    %1659 = vmatpush.bf16.msra.mxu0 %v666
    %1660 = vmatpush.bf16.msra.mxu0 %v662
    %1661 = vmatmul.bf16.gmra.mxu0 %v1652
    %v1662 = vpop.f32.mrf.mxu0
    %v1663 = vadd.f32 0.0, %v1662
    %v1664 = vpop.f32.mrf.mxu0
    %1665 = vdwg.mxu0
    %1666 = vmatpush.bf16.msra.mxu0 %v691
    %1667 = vmatpush.bf16.msra.mxu0 %v687
    %1668 = vmatpush.bf16.msra.mxu0 %v683
    %1669 = vmatpush.bf16.msra.mxu0 %v679
    %1670 = vmatpush.bf16.msra.mxu0 %v675
    %1671 = vmatpush.bf16.msra.mxu0 %v671
    %1672 = vmatpush.bf16.msra.mxu0 %v667
    %1673 = vmatpush.bf16.msra.mxu0 %v663
    %1674 = vmatmul.bf16.gmra.mxu0 %v1652
    %v1675 = vpop.f32.mrf.mxu0
    %v1676 = vadd.f32 0.0, %v1675
    %v1677 = vpop.f32.mrf.mxu0
    %1678 = vdwg.mxu0
    %1679 = vmatpush.bf16.msra.mxu0 %v692
    %1680 = vmatpush.bf16.msra.mxu0 %v688
    %1681 = vmatpush.bf16.msra.mxu0 %v684
    %1682 = vmatpush.bf16.msra.mxu0 %v680
    %1683 = vmatpush.bf16.msra.mxu0 %v676
    %1684 = vmatpush.bf16.msra.mxu0 %v672
    %1685 = vmatpush.bf16.msra.mxu0 %v668
    %1686 = vmatpush.bf16.msra.mxu0 %v664
    %1687 = vmatmul.bf16.gmra.mxu0 %v1652
    %v1688 = vpop.f32.mrf.mxu0
    %v1689 = vadd.f32 0.0, %v1688
    %v1690 = vpop.f32.mrf.mxu0
    %1691 = vdwg.mxu0
    %1692 = vmatpush.bf16.msra.mxu0 %v693
    %1693 = vmatpush.bf16.msra.mxu0 %v689
    %1694 = vmatpush.bf16.msra.mxu0 %v685
    %1695 = vmatpush.bf16.msra.mxu0 %v681
    %1696 = vmatpush.bf16.msra.mxu0 %v677
    %1697 = vmatpush.bf16.msra.mxu0 %v673
    %1698 = vmatpush.bf16.msra.mxu0 %v669
    %1699 = vmatpush.bf16.msra.mxu0 %v665
    %1700 = vmatmul.bf16.gmra.mxu0 %v1652
    %v1701 = vpop.f32.mrf.mxu0
    %v1702 = vadd.f32 0.0, %v1701
    %v1703 = vpop.f32.mrf.mxu0
    %1704 = vdwg.mxu0
    %v1705 = vadd.f32 %v1648, %v1663
    %v1706 = vadd.f32 %v1649, %v1676
    %v1707 = vadd.f32 %v1650, %v1689
    %v1708 = vadd.f32 %v1651, %v1702
    %v1709 = vadd.f32 %v1705, %v784
    %v1710 = vadd.f32 %v1706, %v785
    %v1711 = vadd.f32 %v1707, %v786
    %v1712 = vadd.f32 %v1708, %v787
    %v1713 = vxor.u32 %v1709, 2147483648
    %v1714 = vxor.u32 %v1710, 2147483648
    %v1715 = vxor.u32 %v1711, 2147483648
    %v1716 = vmul.f32 %v1713, 1.442695
    %v1717 = vpow.pop %v1716
    %v1718 = vmul.f32 %v1714, 1.442695
    %v1719 = vpow.pop %v1718
    %v1720 = vmul.f32 %v1715, 1.442695
    %v1721 = vpow.pop %v1720
    %v1722 = vadd.f32 %v1717, 1.0
    %v1723 = vadd.f32 %v1719, 1.0
    %v1724 = vadd.f32 %v1721, 1.0
    %v1725 = vrcp.pop %v1722
    %v1726 = vmul.f32 %v1722, %v1725
    %v1727 = vsub.f32 1.0, %v1726
    %v1728 = vmul.f32 %v1725, %v1727
    %v1729 = vadd.f32 %v1725, %v1728
    %vm1730 = vweird.f32 %v1722
    %vm1731 = vweird.f32 %v1725
    %vm1732 = vmor %vm1730, %vm1731
    %v1733 = vsel %vm1732, %v1725, %v1729
    %v1734 = vand.u32 2147483647, %v1722
    %vm1735 = vcmp.eq.f32.partialorder %v1734, 8.507059e+37
    %v1736 = vand.u32 %v1722, 2147483648
    %v1737 = vor.u32 1.1754944e-38, %v1736
    %v1738 = vsel %vm1735, %v1737, %v1733
    %v1739 = vmul.f32 1.0, %v1738
    %v1740 = vrcp.pop %v1723
    %v1741 = vmul.f32 %v1723, %v1740
    %v1742 = vsub.f32 1.0, %v1741
    %v1743 = vmul.f32 %v1740, %v1742
    %v1744 = vadd.f32 %v1740, %v1743
    %vm1745 = vweird.f32 %v1723
    %vm1746 = vweird.f32 %v1740
    %vm1747 = vmor %vm1745, %vm1746
    %v1748 = vsel %vm1747, %v1740, %v1744
    %v1749 = vand.u32 2147483647, %v1723
    %vm1750 = vcmp.eq.f32.partialorder %v1749, 8.507059e+37
    %v1751 = vand.u32 %v1723, 2147483648
    %v1752 = vor.u32 1.1754944e-38, %v1751
    %v1753 = vsel %vm1750, %v1752, %v1748
    %v1754 = vmul.f32 1.0, %v1753
    %v1755 = vrcp.pop %v1724
    %v1756 = vmul.f32 %v1724, %v1755
    %v1757 = vsub.f32 1.0, %v1756
    %v1758 = vmul.f32 %v1755, %v1757
    %v1759 = vadd.f32 %v1755, %v1758
    %vm1760 = vweird.f32 %v1724
    %vm1761 = vweird.f32 %v1755
    %vm1762 = vmor %vm1760, %vm1761
    %v1763 = vsel %vm1762, %v1755, %v1759
    %v1764 = vand.u32 2147483647, %v1724
    %vm1765 = vcmp.eq.f32.partialorder %v1764, 8.507059e+37
    %v1766 = vand.u32 %v1724, 2147483648
    %v1767 = vor.u32 1.1754944e-38, %v1766
    %v1768 = vsel %vm1765, %v1767, %v1763
    %v1769 = vmul.f32 1.0, %v1768
    %v1770 = vtanh.pop %v1712
    %v1771 = vmul.f32 %v1754, %v1642
    %v1772 = vmul.f32 %v1739, %v1770
    %v1773 = vadd.f32 %v1771, %v1772
    %v1774 = vtanh.pop %v1773
    %v1775 = vmul.f32 %v1769, %v1774
    %s1776 = smul.u32 8, 4
    %s1777 = smul.addr %s1776, 8
    %s1778 = scalar_lea.vmem [#allocation2], %s1777
    %v1779 = vld [vmem:[%s1778] sm:$0xff]
    %v1780 = vld [vmem:[%s1778 + $0x8] sm:$0xff]
    %v1781 = vld [vmem:[%s1778 + $0x10] sm:$0xff]
    %v1782 = vld [vmem:[%s1778 + $0x18] sm:$0xff]
    %v1783 = vpack.c.bf16 %v1775, %v1775
    %1784 = vmatpush.bf16.msra.mxu0 %v690
    %1785 = vmatpush.bf16.msra.mxu0 %v686
    %1786 = vmatpush.bf16.msra.mxu0 %v682
    %1787 = vmatpush.bf16.msra.mxu0 %v678
    %1788 = vmatpush.bf16.msra.mxu0 %v674
    %1789 = vmatpush.bf16.msra.mxu0 %v670
    %1790 = vmatpush.bf16.msra.mxu0 %v666
    %1791 = vmatpush.bf16.msra.mxu0 %v662
    %1792 = vmatmul.bf16.gmra.mxu0 %v1783
    %v1793 = vpop.f32.mrf.mxu0
    %v1794 = vadd.f32 0.0, %v1793
    %v1795 = vpop.f32.mrf.mxu0
    %1796 = vdwg.mxu0
    %1797 = vmatpush.bf16.msra.mxu0 %v691
    %1798 = vmatpush.bf16.msra.mxu0 %v687
    %1799 = vmatpush.bf16.msra.mxu0 %v683
    %1800 = vmatpush.bf16.msra.mxu0 %v679
    %1801 = vmatpush.bf16.msra.mxu0 %v675
    %1802 = vmatpush.bf16.msra.mxu0 %v671
    %1803 = vmatpush.bf16.msra.mxu0 %v667
    %1804 = vmatpush.bf16.msra.mxu0 %v663
    %1805 = vmatmul.bf16.gmra.mxu0 %v1783
    %v1806 = vpop.f32.mrf.mxu0
    %v1807 = vadd.f32 0.0, %v1806
    %v1808 = vpop.f32.mrf.mxu0
    %1809 = vdwg.mxu0
    %1810 = vmatpush.bf16.msra.mxu0 %v692
    %1811 = vmatpush.bf16.msra.mxu0 %v688
    %1812 = vmatpush.bf16.msra.mxu0 %v684
    %1813 = vmatpush.bf16.msra.mxu0 %v680
    %1814 = vmatpush.bf16.msra.mxu0 %v676
    %1815 = vmatpush.bf16.msra.mxu0 %v672
    %1816 = vmatpush.bf16.msra.mxu0 %v668
    %1817 = vmatpush.bf16.msra.mxu0 %v664
    %1818 = vmatmul.bf16.gmra.mxu0 %v1783
    %v1819 = vpop.f32.mrf.mxu0
    %v1820 = vadd.f32 0.0, %v1819
    %v1821 = vpop.f32.mrf.mxu0
    %1822 = vdwg.mxu0
    %1823 = vmatpush.bf16.msra.mxu0 %v693
    %1824 = vmatpush.bf16.msra.mxu0 %v689
    %1825 = vmatpush.bf16.msra.mxu0 %v685
    %1826 = vmatpush.bf16.msra.mxu0 %v681
    %1827 = vmatpush.bf16.msra.mxu0 %v677
    %1828 = vmatpush.bf16.msra.mxu0 %v673
    %1829 = vmatpush.bf16.msra.mxu0 %v669
    %1830 = vmatpush.bf16.msra.mxu0 %v665
    %1831 = vmatmul.bf16.gmra.mxu0 %v1783
    %v1832 = vpop.f32.mrf.mxu0
    %v1833 = vadd.f32 0.0, %v1832
    %v1834 = vpop.f32.mrf.mxu0
    %1835 = vdwg.mxu0
    %v1836 = vadd.f32 %v1779, %v1794
    %v1837 = vadd.f32 %v1780, %v1807
    %v1838 = vadd.f32 %v1781, %v1820
    %v1839 = vadd.f32 %v1782, %v1833
    %v1840 = vadd.f32 %v1836, %v784
    %v1841 = vadd.f32 %v1837, %v785
    %v1842 = vadd.f32 %v1838, %v786
    %v1843 = vadd.f32 %v1839, %v787
    %v1844 = vxor.u32 %v1840, 2147483648
    %v1845 = vxor.u32 %v1841, 2147483648
    %v1846 = vxor.u32 %v1842, 2147483648
    %v1847 = vmul.f32 %v1844, 1.442695
    %v1848 = vpow.pop %v1847
    %v1849 = vmul.f32 %v1845, 1.442695
    %v1850 = vpow.pop %v1849
    %v1851 = vmul.f32 %v1846, 1.442695
    %v1852 = vpow.pop %v1851
    %v1853 = vadd.f32 %v1848, 1.0
    %v1854 = vadd.f32 %v1850, 1.0
    %v1855 = vadd.f32 %v1852, 1.0
    %v1856 = vrcp.pop %v1853
    %v1857 = vmul.f32 %v1853, %v1856
    %v1858 = vsub.f32 1.0, %v1857
    %v1859 = vmul.f32 %v1856, %v1858
    %v1860 = vadd.f32 %v1856, %v1859
    %vm1861 = vweird.f32 %v1853
    %vm1862 = vweird.f32 %v1856
    %vm1863 = vmor %vm1861, %vm1862
    %v1864 = vsel %vm1863, %v1856, %v1860
    %v1865 = vand.u32 2147483647, %v1853
    %vm1866 = vcmp.eq.f32.partialorder %v1865, 8.507059e+37
    %v1867 = vand.u32 %v1853, 2147483648
    %v1868 = vor.u32 1.1754944e-38, %v1867
    %v1869 = vsel %vm1866, %v1868, %v1864
    %v1870 = vmul.f32 1.0, %v1869
    %v1871 = vrcp.pop %v1854
    %v1872 = vmul.f32 %v1854, %v1871
    %v1873 = vsub.f32 1.0, %v1872
    %v1874 = vmul.f32 %v1871, %v1873
    %v1875 = vadd.f32 %v1871, %v1874
    %vm1876 = vweird.f32 %v1854
    %vm1877 = vweird.f32 %v1871
    %vm1878 = vmor %vm1876, %vm1877
    %v1879 = vsel %vm1878, %v1871, %v1875
    %v1880 = vand.u32 2147483647, %v1854
    %vm1881 = vcmp.eq.f32.partialorder %v1880, 8.507059e+37
    %v1882 = vand.u32 %v1854, 2147483648
    %v1883 = vor.u32 1.1754944e-38, %v1882
    %v1884 = vsel %vm1881, %v1883, %v1879
    %v1885 = vmul.f32 1.0, %v1884
    %v1886 = vrcp.pop %v1855
    %v1887 = vmul.f32 %v1855, %v1886
    %v1888 = vsub.f32 1.0, %v1887
    %v1889 = vmul.f32 %v1886, %v1888
    %v1890 = vadd.f32 %v1886, %v1889
    %vm1891 = vweird.f32 %v1855
    %vm1892 = vweird.f32 %v1886
    %vm1893 = vmor %vm1891, %vm1892
    %v1894 = vsel %vm1893, %v1886, %v1890
    %v1895 = vand.u32 2147483647, %v1855
    %vm1896 = vcmp.eq.f32.partialorder %v1895, 8.507059e+37
    %v1897 = vand.u32 %v1855, 2147483648
    %v1898 = vor.u32 1.1754944e-38, %v1897
    %v1899 = vsel %vm1896, %v1898, %v1894
    %v1900 = vmul.f32 1.0, %v1899
    %v1901 = vtanh.pop %v1843
    %v1902 = vmul.f32 %v1885, %v1773
    %v1903 = vmul.f32 %v1870, %v1901
    %v1904 = vadd.f32 %v1902, %v1903
    %v1905 = vtanh.pop %v1904
    %v1906 = vmul.f32 %v1900, %v1905
    %s1907 = smul.u32 9, 4
    %s1908 = smul.addr %s1907, 8
    %s1909 = scalar_lea.vmem [#allocation2], %s1908
    %v1910 = vld [vmem:[%s1909] sm:$0xff]
    %v1911 = vld [vmem:[%s1909 + $0x8] sm:$0xff]
    %v1912 = vld [vmem:[%s1909 + $0x10] sm:$0xff]
    %v1913 = vld [vmem:[%s1909 + $0x18] sm:$0xff]
    %v1914 = vpack.c.bf16 %v1906, %v1906
    %1915 = vmatpush.bf16.msra.mxu0 %v690
    %1916 = vmatpush.bf16.msra.mxu0 %v686
    %1917 = vmatpush.bf16.msra.mxu0 %v682
    %1918 = vmatpush.bf16.msra.mxu0 %v678
    %1919 = vmatpush.bf16.msra.mxu0 %v674
    %1920 = vmatpush.bf16.msra.mxu0 %v670
    %1921 = vmatpush.bf16.msra.mxu0 %v666
    %1922 = vmatpush.bf16.msra.mxu0 %v662
    %1923 = vmatmul.bf16.gmra.mxu0 %v1914
    %v1924 = vpop.f32.mrf.mxu0
    %v1925 = vadd.f32 0.0, %v1924
    %v1926 = vpop.f32.mrf.mxu0
    %1927 = vdwg.mxu0
    %1928 = vmatpush.bf16.msra.mxu0 %v691
    %1929 = vmatpush.bf16.msra.mxu0 %v687
    %1930 = vmatpush.bf16.msra.mxu0 %v683
    %1931 = vmatpush.bf16.msra.mxu0 %v679
    %1932 = vmatpush.bf16.msra.mxu0 %v675
    %1933 = vmatpush.bf16.msra.mxu0 %v671
    %1934 = vmatpush.bf16.msra.mxu0 %v667
    %1935 = vmatpush.bf16.msra.mxu0 %v663
    %1936 = vmatmul.bf16.gmra.mxu0 %v1914
    %v1937 = vpop.f32.mrf.mxu0
    %v1938 = vadd.f32 0.0, %v1937
    %v1939 = vpop.f32.mrf.mxu0
    %1940 = vdwg.mxu0
    %1941 = vmatpush.bf16.msra.mxu0 %v692
    %1942 = vmatpush.bf16.msra.mxu0 %v688
    %1943 = vmatpush.bf16.msra.mxu0 %v684
    %1944 = vmatpush.bf16.msra.mxu0 %v680
    %1945 = vmatpush.bf16.msra.mxu0 %v676
    %1946 = vmatpush.bf16.msra.mxu0 %v672
    %1947 = vmatpush.bf16.msra.mxu0 %v668
    %1948 = vmatpush.bf16.msra.mxu0 %v664
    %1949 = vmatmul.bf16.gmra.mxu0 %v1914
    %v1950 = vpop.f32.mrf.mxu0
    %v1951 = vadd.f32 0.0, %v1950
    %v1952 = vpop.f32.mrf.mxu0
    %1953 = vdwg.mxu0
    %1954 = vmatpush.bf16.msra.mxu0 %v693
    %1955 = vmatpush.bf16.msra.mxu0 %v689
    %1956 = vmatpush.bf16.msra.mxu0 %v685
    %1957 = vmatpush.bf16.msra.mxu0 %v681
    %1958 = vmatpush.bf16.msra.mxu0 %v677
    %1959 = vmatpush.bf16.msra.mxu0 %v673
    %1960 = vmatpush.bf16.msra.mxu0 %v669
    %1961 = vmatpush.bf16.msra.mxu0 %v665
    %1962 = vmatmul.bf16.gmra.mxu0 %v1914
    %v1963 = vpop.f32.mrf.mxu0
    %v1964 = vadd.f32 0.0, %v1963
    %v1965 = vpop.f32.mrf.mxu0
    %1966 = vdwg.mxu0
    %v1967 = vadd.f32 %v1910, %v1925
    %v1968 = vadd.f32 %v1911, %v1938
    %v1969 = vadd.f32 %v1912, %v1951
    %v1970 = vadd.f32 %v1913, %v1964
    %v1971 = vadd.f32 %v1967, %v784
    %v1972 = vadd.f32 %v1968, %v785
    %v1973 = vadd.f32 %v1969, %v786
    %v1974 = vadd.f32 %v1970, %v787
    %v1975 = vxor.u32 %v1971, 2147483648
    %v1976 = vxor.u32 %v1972, 2147483648
    %v1977 = vxor.u32 %v1973, 2147483648
    %v1978 = vmul.f32 %v1975, 1.442695
    %v1979 = vpow.pop %v1978
    %v1980 = vmul.f32 %v1976, 1.442695
    %v1981 = vpow.pop %v1980
    %v1982 = vmul.f32 %v1977, 1.442695
    %v1983 = vpow.pop %v1982
    %v1984 = vadd.f32 %v1979, 1.0
    %v1985 = vadd.f32 %v1981, 1.0
    %v1986 = vadd.f32 %v1983, 1.0
    %v1987 = vrcp.pop %v1984
    %v1988 = vmul.f32 %v1984, %v1987
    %v1989 = vsub.f32 1.0, %v1988
    %v1990 = vmul.f32 %v1987, %v1989
    %v1991 = vadd.f32 %v1987, %v1990
    %vm1992 = vweird.f32 %v1984
    %vm1993 = vweird.f32 %v1987
    %vm1994 = vmor %vm1992, %vm1993
    %v1995 = vsel %vm1994, %v1987, %v1991
    %v1996 = vand.u32 2147483647, %v1984
    %vm1997 = vcmp.eq.f32.partialorder %v1996, 8.507059e+37
    %v1998 = vand.u32 %v1984, 2147483648
    %v1999 = vor.u32 1.1754944e-38, %v1998
    %v2000 = vsel %vm1997, %v1999, %v1995
    %v2001 = vmul.f32 1.0, %v2000
    %v2002 = vrcp.pop %v1985
    %v2003 = vmul.f32 %v1985, %v2002
    %v2004 = vsub.f32 1.0, %v2003
    %v2005 = vmul.f32 %v2002, %v2004
    %v2006 = vadd.f32 %v2002, %v2005
    %vm2007 = vweird.f32 %v1985
    %vm2008 = vweird.f32 %v2002
    %vm2009 = vmor %vm2007, %vm2008
    %v2010 = vsel %vm2009, %v2002, %v2006
    %v2011 = vand.u32 2147483647, %v1985
    %vm2012 = vcmp.eq.f32.partialorder %v2011, 8.507059e+37
    %v2013 = vand.u32 %v1985, 2147483648
    %v2014 = vor.u32 1.1754944e-38, %v2013
    %v2015 = vsel %vm2012, %v2014, %v2010
    %v2016 = vmul.f32 1.0, %v2015
    %v2017 = vrcp.pop %v1986
    %v2018 = vmul.f32 %v1986, %v2017
    %v2019 = vsub.f32 1.0, %v2018
    %v2020 = vmul.f32 %v2017, %v2019
    %v2021 = vadd.f32 %v2017, %v2020
    %vm2022 = vweird.f32 %v1986
    %vm2023 = vweird.f32 %v2017
    %vm2024 = vmor %vm2022, %vm2023
    %v2025 = vsel %vm2024, %v2017, %v2021
    %v2026 = vand.u32 2147483647, %v1986
    %vm2027 = vcmp.eq.f32.partialorder %v2026, 8.507059e+37
    %v2028 = vand.u32 %v1986, 2147483648
    %v2029 = vor.u32 1.1754944e-38, %v2028
    %v2030 = vsel %vm2027, %v2029, %v2025
    %v2031 = vmul.f32 1.0, %v2030
    %v2032 = vtanh.pop %v1974
    %v2033 = vmul.f32 %v2016, %v1904
    %v2034 = vmul.f32 %v2001, %v2032
    %v2035 = vadd.f32 %v2033, %v2034
    %v2036 = vtanh.pop %v2035
    %v2037 = vmul.f32 %v2031, %v2036
    %s2038 = smul.u32 10, 4
    %s2039 = smul.addr %s2038, 8
    %s2040 = scalar_lea.vmem [#allocation2], %s2039
    %v2041 = vld [vmem:[%s2040] sm:$0xff]
    %v2042 = vld [vmem:[%s2040 + $0x8] sm:$0xff]
    %v2043 = vld [vmem:[%s2040 + $0x10] sm:$0xff]
    %v2044 = vld [vmem:[%s2040 + $0x18] sm:$0xff]
    %v2045 = vpack.c.bf16 %v2037, %v2037
    %2046 = vmatpush.bf16.msra.mxu0 %v690
    %2047 = vmatpush.bf16.msra.mxu0 %v686
    %2048 = vmatpush.bf16.msra.mxu0 %v682
    %2049 = vmatpush.bf16.msra.mxu0 %v678
    %2050 = vmatpush.bf16.msra.mxu0 %v674
    %2051 = vmatpush.bf16.msra.mxu0 %v670
    %2052 = vmatpush.bf16.msra.mxu0 %v666
    %2053 = vmatpush.bf16.msra.mxu0 %v662
    %2054 = vmatmul.bf16.gmra.mxu0 %v2045
    %v2055 = vpop.f32.mrf.mxu0
    %v2056 = vadd.f32 0.0, %v2055
    %v2057 = vpop.f32.mrf.mxu0
    %2058 = vdwg.mxu0
    %2059 = vmatpush.bf16.msra.mxu0 %v691
    %2060 = vmatpush.bf16.msra.mxu0 %v687
    %2061 = vmatpush.bf16.msra.mxu0 %v683
    %2062 = vmatpush.bf16.msra.mxu0 %v679
    %2063 = vmatpush.bf16.msra.mxu0 %v675
    %2064 = vmatpush.bf16.msra.mxu0 %v671
    %2065 = vmatpush.bf16.msra.mxu0 %v667
    %2066 = vmatpush.bf16.msra.mxu0 %v663
    %2067 = vmatmul.bf16.gmra.mxu0 %v2045
    %v2068 = vpop.f32.mrf.mxu0
    %v2069 = vadd.f32 0.0, %v2068
    %v2070 = vpop.f32.mrf.mxu0
    %2071 = vdwg.mxu0
    %2072 = vmatpush.bf16.msra.mxu0 %v692
    %2073 = vmatpush.bf16.msra.mxu0 %v688
    %2074 = vmatpush.bf16.msra.mxu0 %v684
    %2075 = vmatpush.bf16.msra.mxu0 %v680
    %2076 = vmatpush.bf16.msra.mxu0 %v676
    %2077 = vmatpush.bf16.msra.mxu0 %v672
    %2078 = vmatpush.bf16.msra.mxu0 %v668
    %2079 = vmatpush.bf16.msra.mxu0 %v664
    %2080 = vmatmul.bf16.gmra.mxu0 %v2045
    %v2081 = vpop.f32.mrf.mxu0
    %v2082 = vadd.f32 0.0, %v2081
    %v2083 = vpop.f32.mrf.mxu0
    %2084 = vdwg.mxu0
    %2085 = vmatpush.bf16.msra.mxu0 %v693
    %2086 = vmatpush.bf16.msra.mxu0 %v689
    %2087 = vmatpush.bf16.msra.mxu0 %v685
    %2088 = vmatpush.bf16.msra.mxu0 %v681
    %2089 = vmatpush.bf16.msra.mxu0 %v677
    %2090 = vmatpush.bf16.msra.mxu0 %v673
    %2091 = vmatpush.bf16.msra.mxu0 %v669
    %2092 = vmatpush.bf16.msra.mxu0 %v665
    %2093 = vmatmul.bf16.gmra.mxu0 %v2045
    %v2094 = vpop.f32.mrf.mxu0
    %v2095 = vadd.f32 0.0, %v2094
    %v2096 = vpop.f32.mrf.mxu0
    %2097 = vdwg.mxu0
    %v2098 = vadd.f32 %v2041, %v2056
    %v2099 = vadd.f32 %v2042, %v2069
    %v2100 = vadd.f32 %v2043, %v2082
    %v2101 = vadd.f32 %v2044, %v2095
    %v2102 = vadd.f32 %v2098, %v784
    %v2103 = vadd.f32 %v2099, %v785
    %v2104 = vadd.f32 %v2100, %v786
    %v2105 = vadd.f32 %v2101, %v787
    %v2106 = vxor.u32 %v2102, 2147483648
    %v2107 = vxor.u32 %v2103, 2147483648
    %v2108 = vxor.u32 %v2104, 2147483648
    %v2109 = vmul.f32 %v2106, 1.442695
    %v2110 = vpow.pop %v2109
    %v2111 = vmul.f32 %v2107, 1.442695
    %v2112 = vpow.pop %v2111
    %v2113 = vmul.f32 %v2108, 1.442695
    %v2114 = vpow.pop %v2113
    %v2115 = vadd.f32 %v2110, 1.0
    %v2116 = vadd.f32 %v2112, 1.0
    %v2117 = vadd.f32 %v2114, 1.0
    %v2118 = vrcp.pop %v2115
    %v2119 = vmul.f32 %v2115, %v2118
    %v2120 = vsub.f32 1.0, %v2119
    %v2121 = vmul.f32 %v2118, %v2120
    %v2122 = vadd.f32 %v2118, %v2121
    %vm2123 = vweird.f32 %v2115
    %vm2124 = vweird.f32 %v2118
    %vm2125 = vmor %vm2123, %vm2124
    %v2126 = vsel %vm2125, %v2118, %v2122
    %v2127 = vand.u32 2147483647, %v2115
    %vm2128 = vcmp.eq.f32.partialorder %v2127, 8.507059e+37
    %v2129 = vand.u32 %v2115, 2147483648
    %v2130 = vor.u32 1.1754944e-38, %v2129
    %v2131 = vsel %vm2128, %v2130, %v2126
    %v2132 = vmul.f32 1.0, %v2131
    %v2133 = vrcp.pop %v2116
    %v2134 = vmul.f32 %v2116, %v2133
    %v2135 = vsub.f32 1.0, %v2134
    %v2136 = vmul.f32 %v2133, %v2135
    %v2137 = vadd.f32 %v2133, %v2136
    %vm2138 = vweird.f32 %v2116
    %vm2139 = vweird.f32 %v2133
    %vm2140 = vmor %vm2138, %vm2139
    %v2141 = vsel %vm2140, %v2133, %v2137
    %v2142 = vand.u32 2147483647, %v2116
    %vm2143 = vcmp.eq.f32.partialorder %v2142, 8.507059e+37
    %v2144 = vand.u32 %v2116, 2147483648
    %v2145 = vor.u32 1.1754944e-38, %v2144
    %v2146 = vsel %vm2143, %v2145, %v2141
    %v2147 = vmul.f32 1.0, %v2146
    %v2148 = vrcp.pop %v2117
    %v2149 = vmul.f32 %v2117, %v2148
    %v2150 = vsub.f32 1.0, %v2149
    %v2151 = vmul.f32 %v2148, %v2150
    %v2152 = vadd.f32 %v2148, %v2151
    %vm2153 = vweird.f32 %v2117
    %vm2154 = vweird.f32 %v2148
    %vm2155 = vmor %vm2153, %vm2154
    %v2156 = vsel %vm2155, %v2148, %v2152
    %v2157 = vand.u32 2147483647, %v2117
    %vm2158 = vcmp.eq.f32.partialorder %v2157, 8.507059e+37
    %v2159 = vand.u32 %v2117, 2147483648
    %v2160 = vor.u32 1.1754944e-38, %v2159
    %v2161 = vsel %vm2158, %v2160, %v2156
    %v2162 = vmul.f32 1.0, %v2161
    %v2163 = vtanh.pop %v2105
    %v2164 = vmul.f32 %v2147, %v2035
    %v2165 = vmul.f32 %v2132, %v2163
    %v2166 = vadd.f32 %v2164, %v2165
    %v2167 = vtanh.pop %v2166
    %v2168 = vmul.f32 %v2162, %v2167
    %s2169 = smul.u32 11, 4
    %s2170 = smul.addr %s2169, 8
    %s2171 = scalar_lea.vmem [#allocation2], %s2170
    %v2172 = vld [vmem:[%s2171] sm:$0xff]
    %v2173 = vld [vmem:[%s2171 + $0x8] sm:$0xff]
    %v2174 = vld [vmem:[%s2171 + $0x10] sm:$0xff]
    %v2175 = vld [vmem:[%s2171 + $0x18] sm:$0xff]
    %v2176 = vpack.c.bf16 %v2168, %v2168
    %2177 = vmatpush.bf16.msra.mxu0 %v690
    %2178 = vmatpush.bf16.msra.mxu0 %v686
    %2179 = vmatpush.bf16.msra.mxu0 %v682
    %2180 = vmatpush.bf16.msra.mxu0 %v678
    %2181 = vmatpush.bf16.msra.mxu0 %v674
    %2182 = vmatpush.bf16.msra.mxu0 %v670
    %2183 = vmatpush.bf16.msra.mxu0 %v666
    %2184 = vmatpush.bf16.msra.mxu0 %v662
    %2185 = vmatmul.bf16.gmra.mxu0 %v2176
    %v2186 = vpop.f32.mrf.mxu0
    %v2187 = vadd.f32 0.0, %v2186
    %v2188 = vpop.f32.mrf.mxu0
    %2189 = vdwg.mxu0
    %2190 = vmatpush.bf16.msra.mxu0 %v691
    %2191 = vmatpush.bf16.msra.mxu0 %v687
    %2192 = vmatpush.bf16.msra.mxu0 %v683
    %2193 = vmatpush.bf16.msra.mxu0 %v679
    %2194 = vmatpush.bf16.msra.mxu0 %v675
    %2195 = vmatpush.bf16.msra.mxu0 %v671
    %2196 = vmatpush.bf16.msra.mxu0 %v667
    %2197 = vmatpush.bf16.msra.mxu0 %v663
    %2198 = vmatmul.bf16.gmra.mxu0 %v2176
    %v2199 = vpop.f32.mrf.mxu0
    %v2200 = vadd.f32 0.0, %v2199
    %v2201 = vpop.f32.mrf.mxu0
    %2202 = vdwg.mxu0
    %2203 = vmatpush.bf16.msra.mxu0 %v692
    %2204 = vmatpush.bf16.msra.mxu0 %v688
    %2205 = vmatpush.bf16.msra.mxu0 %v684
    %2206 = vmatpush.bf16.msra.mxu0 %v680
    %2207 = vmatpush.bf16.msra.mxu0 %v676
    %2208 = vmatpush.bf16.msra.mxu0 %v672
    %2209 = vmatpush.bf16.msra.mxu0 %v668
    %2210 = vmatpush.bf16.msra.mxu0 %v664
    %2211 = vmatmul.bf16.gmra.mxu0 %v2176
    %v2212 = vpop.f32.mrf.mxu0
    %v2213 = vadd.f32 0.0, %v2212
    %v2214 = vpop.f32.mrf.mxu0
    %2215 = vdwg.mxu0
    %2216 = vmatpush.bf16.msra.mxu0 %v693
    %2217 = vmatpush.bf16.msra.mxu0 %v689
    %2218 = vmatpush.bf16.msra.mxu0 %v685
    %2219 = vmatpush.bf16.msra.mxu0 %v681
    %2220 = vmatpush.bf16.msra.mxu0 %v677
    %2221 = vmatpush.bf16.msra.mxu0 %v673
    %2222 = vmatpush.bf16.msra.mxu0 %v669
    %2223 = vmatpush.bf16.msra.mxu0 %v665
    %2224 = vmatmul.bf16.gmra.mxu0 %v2176
    %v2225 = vpop.f32.mrf.mxu0
    %v2226 = vadd.f32 0.0, %v2225
    %v2227 = vpop.f32.mrf.mxu0
    %2228 = vdwg.mxu0
    %v2229 = vadd.f32 %v2172, %v2187
    %v2230 = vadd.f32 %v2173, %v2200
    %v2231 = vadd.f32 %v2174, %v2213
    %v2232 = vadd.f32 %v2175, %v2226
    %v2233 = vadd.f32 %v2229, %v784
    %v2234 = vadd.f32 %v2230, %v785
    %v2235 = vadd.f32 %v2231, %v786
    %v2236 = vadd.f32 %v2232, %v787
    %v2237 = vxor.u32 %v2233, 2147483648
    %v2238 = vxor.u32 %v2234, 2147483648
    %v2239 = vxor.u32 %v2235, 2147483648
    %v2240 = vmul.f32 %v2237, 1.442695
    %v2241 = vpow.pop %v2240
    %v2242 = vmul.f32 %v2238, 1.442695
    %v2243 = vpow.pop %v2242
    %v2244 = vmul.f32 %v2239, 1.442695
    %v2245 = vpow.pop %v2244
    %v2246 = vadd.f32 %v2241, 1.0
    %v2247 = vadd.f32 %v2243, 1.0
    %v2248 = vadd.f32 %v2245, 1.0
    %v2249 = vrcp.pop %v2246
    %v2250 = vmul.f32 %v2246, %v2249
    %v2251 = vsub.f32 1.0, %v2250
    %v2252 = vmul.f32 %v2249, %v2251
    %v2253 = vadd.f32 %v2249, %v2252
    %vm2254 = vweird.f32 %v2246
    %vm2255 = vweird.f32 %v2249
    %vm2256 = vmor %vm2254, %vm2255
    %v2257 = vsel %vm2256, %v2249, %v2253
    %v2258 = vand.u32 2147483647, %v2246
    %vm2259 = vcmp.eq.f32.partialorder %v2258, 8.507059e+37
    %v2260 = vand.u32 %v2246, 2147483648
    %v2261 = vor.u32 1.1754944e-38, %v2260
    %v2262 = vsel %vm2259, %v2261, %v2257
    %v2263 = vmul.f32 1.0, %v2262
    %v2264 = vrcp.pop %v2247
    %v2265 = vmul.f32 %v2247, %v2264
    %v2266 = vsub.f32 1.0, %v2265
    %v2267 = vmul.f32 %v2264, %v2266
    %v2268 = vadd.f32 %v2264, %v2267
    %vm2269 = vweird.f32 %v2247
    %vm2270 = vweird.f32 %v2264
    %vm2271 = vmor %vm2269, %vm2270
    %v2272 = vsel %vm2271, %v2264, %v2268
    %v2273 = vand.u32 2147483647, %v2247
    %vm2274 = vcmp.eq.f32.partialorder %v2273, 8.507059e+37
    %v2275 = vand.u32 %v2247, 2147483648
    %v2276 = vor.u32 1.1754944e-38, %v2275
    %v2277 = vsel %vm2274, %v2276, %v2272
    %v2278 = vmul.f32 1.0, %v2277
    %v2279 = vrcp.pop %v2248
    %v2280 = vmul.f32 %v2248, %v2279
    %v2281 = vsub.f32 1.0, %v2280
    %v2282 = vmul.f32 %v2279, %v2281
    %v2283 = vadd.f32 %v2279, %v2282
    %vm2284 = vweird.f32 %v2248
    %vm2285 = vweird.f32 %v2279
    %vm2286 = vmor %vm2284, %vm2285
    %v2287 = vsel %vm2286, %v2279, %v2283
    %v2288 = vand.u32 2147483647, %v2248
    %vm2289 = vcmp.eq.f32.partialorder %v2288, 8.507059e+37
    %v2290 = vand.u32 %v2248, 2147483648
    %v2291 = vor.u32 1.1754944e-38, %v2290
    %v2292 = vsel %vm2289, %v2291, %v2287
    %v2293 = vmul.f32 1.0, %v2292
    %v2294 = vtanh.pop %v2236
    %v2295 = vmul.f32 %v2278, %v2166
    %v2296 = vmul.f32 %v2263, %v2294
    %v2297 = vadd.f32 %v2295, %v2296
    %v2298 = vtanh.pop %v2297
    %v2299 = vmul.f32 %v2293, %v2298
    %2300 = vst [vmem:[#allocation11] sm:$0xff] %v2299
    %2301 = vst [vmem:[#allocation12] sm:$0xff] %v2297
    // Predicated region
    $region34: #{tpu_custom_call.1} parent=1 // pred_check
      _
    $region35: #{tpu_custom_call.1} parent=1 // pred_check_branch
      %2303 = sbr.rel (0) target = $region37
    $region36: #{tpu_custom_call.1} parent=1 // pred_region
      %2305 = vsyncadd [#allocation5], 0
      %s2307 = sshll.u32 [#allocation11], 4
      %s2308 = int_to_ptr.vmem [resolvable:$true] %s2307
      %s2309 = sshll.u32 %s4, 4
      %s2310 = int_to_ptr.hbm [resolvable:$true] %s2309
      %2312 = dma.vmem_to_hbm [thread:$0]  %s2308, 128, %s2310, [#allocation5]
    $region37: #{tpu_custom_call.1} parent=1 // pred_fallthru
      _
    // Predicated region
    $region38: #{tpu_custom_call.1} parent=1 // pred_check
      _
    $region39: #{tpu_custom_call.1} parent=1 // pred_check_branch
      %2314 = sbr.rel (0) target = $region41
    $region40: #{tpu_custom_call.1} parent=1 // pred_region
      %2316 = vsyncadd [#allocation13], 0
      %s2318 = sshll.u32 [#allocation12], 4
      %s2319 = int_to_ptr.vmem [resolvable:$true] %s2318
      %s2320 = sshll.u32 %s5, 4
      %s2321 = int_to_ptr.hbm [resolvable:$true] %s2320
      %2323 = dma.vmem_to_hbm [thread:$0]  %s2319, 128, %s2321, [#allocation13]
    $region41: #{tpu_custom_call.1} parent=1 // pred_fallthru
      _
    // Predicated region
    $region42: #{tpu_custom_call.1} parent=1 // pred_check
      _
    $region43: #{tpu_custom_call.1} parent=1 // pred_check_branch
      %2325 = sbr.rel (0) target = $region45
    $region44: #{tpu_custom_call.1} parent=1 // pred_region
      %2327 = dma.done [#allocation5], 128
    $region45: #{tpu_custom_call.1} parent=1 // pred_fallthru
      _
    // Predicated region
    $region46: #{tpu_custom_call.1} parent=1 // pred_check
      _
    $region47: #{tpu_custom_call.1} parent=1 // pred_check_branch
      %2329 = sbr.rel (0) target = $region49
    $region48: #{tpu_custom_call.1} parent=1 // pred_region
      %2331 = dma.done [#allocation13], 128
    $region49: #{tpu_custom_call.1} parent=1 // pred_fallthru
      _
    %2332 = vsyncpa [#allocation4], 1
    %2333 = vsyncpa [#allocation7], 1
    %2334 = vsyncpa [#allocation10], 1
    %2335 = vsyncpa [#allocation5], 1
    %2336 = vsyncpa [#allocation13], 1

</llo_original>
